<compile_context>
chip_gen: v5e
topology: v5e:2x2
jax: 0.10.0
libtpu: 0.0.40
codegen_flags: <defaults>
</compile_context>

<pallas_src>
from functools import partial

import numpy as np
import jax
import jax.numpy as jnp
from jax import lax
from jax.experimental import pallas as pl
from jax.experimental.pallas import tpu as pltpu


def _round_up(x, m):
    return ((x + m - 1) // m) * m


def _hann_periodic(n_fft):
    # librosa.filters.get_window('hann', n_fft, fftbins=True)
    n = np.arange(n_fft)
    return 0.5 - 0.5 * np.cos(2.0 * np.pi * n / n_fft)


def _vmem_limit_bytes():
    # Review: ~96 MiB on v5e/v6e (128 MiB physical), <= ~48 MiB on v7x (64 MiB).
    try:
        cap = int(pltpu.get_tpu_info().vmem_capacity_bytes)
    except Exception:
        cap = 128 * 1024 * 1024
    return int(min(cap * 3 // 4, 100 * 1024 * 1024))


# ----------------------------------------------------------------------------
# Host-side parameter construction (mirrors the module __init__, no librosa).
# ----------------------------------------------------------------------------
def make_istft_params(n_fft, hop_size, scaled=False):
    """Returns (A, Bm, Wr, Wi, ola_window).

    s = real_half @ A + imag_half @ Bm  reproduces the torch module's
    conv_real(full_real) - conv_imag(full_imag); the conjugate-symmetric mirroring
    of the half spectrum is folded into A / Bm.  A / Bm columns are zero-padded
    from n_fft to ceil(n_fft/hop)*hop so the OLA sees an integer number of
    hop-wide blocks per frame (this replaces the old "hop must divide n_fft"
    fast-path restriction).  Wr / Wi are kept only for the numpy reference.
    """
    if not hop_size:
        hop_size = n_fft // 4
    hann = _hann_periodic(n_fft)
    ohm = np.exp(2.0 * np.pi * 1j / n_fft)
    w = np.arange(n_fft)[:, None] * np.arange(n_fft)[None, :]
    W = np.power(ohm, w) * hann[None, :]
    W = W / 2.0 if scaled else W / n_fft
    Wr, Wi = np.real(W), np.imag(W)

    n_bins = n_fft // 2 + 1
    A = Wr[:n_bins].copy()           # coefficient of real_half[k]
    Bm = -Wi[:n_bins].copy()         # coefficient of imag_half[k]
    for k in range(1, n_fft // 2):   # mirrored bins (DC & Nyquist excluded)
        A[k] += Wr[n_fft - k]
        Bm[k] += Wi[n_fft - k]

    R = -(-n_fft // hop_size)        # blocks of width `hop` per frame
    n_fft_pad = R * hop_size
    if n_fft_pad > n_fft:
        pad = np.zeros((n_bins, n_fft_pad - n_fft))
        A = np.concatenate([A, pad], axis=1)
        Bm = np.concatenate([Bm, pad], axis=1)

    ola_window = hann ** 2           # librosa.util.normalize(hann, norm=None) = hann
    return (A.astype(np.float32), Bm.astype(np.float32),
            Wr.astype(np.float32), Wi.astype(np.float32),
            ola_window.astype(np.float32))


# ----------------------------------------------------------------------------
# Kernel: one (batch b, output-row tile g) step.
# ----------------------------------------------------------------------------
def _istft_ola_kernel(real_ref, imag_ref, wa_ref, wb_ref, inv_ref, out_ref,
                      carry_ref, *, n_frames, tm, hop, R, mask_frames):
    """
    real_ref/imag_ref : (1, 1, tm, n_bins)  frames g*tm .. g*tm+tm-1 (index clamped)
    wa_ref/wb_ref     : (n_bins, R*hop)     fused IDFT weights (constant block)
    inv_ref           : (tm, hop)           1 / window-overlap-add for this row tile
    out_ref           : (1, tm, hop)        output rows g*tm .. g*tm+tm-1
    carry_ref         : (max(R-1,1), hop)   spill of this tile into the next (VMEM)
    """
    g = pl.program_id(1)

    real = real_ref[0, 0]
    imag = imag_ref[0, 0]
    if mask_frames:
        # Frames past the real clip (ragged last tile / padded rows / clamped
        # duplicate reads) are undefined in the DMA'd block: zero them BEFORE the
        # matmul so they contribute nothing (where() also kills NaNs).
        n_valid = n_frames - g * tm
        fidx = lax.broadcasted_iota(jnp.int32, real.shape, 0)
        keep = fidx < n_valid
        real = jnp.where(keep, real, 0.0)
        imag = jnp.where(keep, imag, 0.0)

    # Fused half-spectrum "1x1-conv IDFT": two MXU matmuls, f32 accumulation.
    s = (jnp.dot(real, wa_ref[...], preferred_element_type=jnp.float32) +
         jnp.dot(imag, wb_ref[...], preferred_element_type=jnp.float32))

    if R == 1:                       # frames do not overlap: reshape + scale only
        out_ref[0] = s * inv_ref[...]
        return

    @pl.when(g == 0)                 # new batch element -> no spill from the left
    def _():
        carry_ref[...] = jnp.zeros_like(carry_ref)

    carry_in = carry_ref[...]        # (R-1, hop) spill from the previous tile

    # Write-once overlap-add.  Owned output row q (global row g*tm + q) equals
    #   sum_{j=0..R-1, 0 <= q-j < tm} s[q - j, j*hop:(j+1)*hop]
    # plus, for q < R-1, the previous tile's spill.  Each j-term is a sublane roll
    # (XLU, off the VALU/store path); the wrapped rows of the roll are exactly the
    # contribution of this tile's last frames to the NEXT tile's first rows.
    acc = s[:, 0:hop]
    row = lax.broadcasted_iota(jnp.int32, (tm, hop), 0)
    crow = lax.broadcasted_iota(jnp.int32, (R - 1, hop), 0)
    new_carry = jnp.zeros((R - 1, hop), jnp.float32)
    for j in range(1, R):            # R = ceil(n_fft / hop), small -> static unroll
        rolled = pltpu.roll(s[:, j * hop:(j + 1) * hop], shift=j, axis=0)
        acc = acc + jnp.where(row >= j, rolled, 0.0)
        new_carry = new_carry + jnp.where(crow < j, rolled[0:R - 1, :], 0.0)
    carry_ref[...] = new_carry

    # Single full-width store of the owned rows, window normalisation fused.
    out_ref[0] = acc * inv_ref[...]
    # The previous tile's spill only touches the first R-1 rows (tiny RMW).
    out_ref[0, 0:R - 1, :] += carry_in * inv_ref[0:R - 1, :]


# ----------------------------------------------------------------------------
# Wrapper: tiling, window-sum precompute, pallas_call, edge trim.
# ----------------------------------------------------------------------------
def istft_forward(real_stft, imag_stft, *, n_fft, hop_size, A, Bm, ola_window,
                  length=None, frame_tile=256):
    """real_stft / imag_stft: (batch, 1, n_frames, n_fft//2 + 1), any float dtype."""
    hop = hop_size if hop_size else n_fft // 4
    B, C, n_frames, n_bins = real_stft.shape
    assert C == 1 and n_bins == n_fft // 2 + 1
    R = -(-n_fft // hop)                         # hop-wide blocks per frame
    n_fft_pad = R * hop
    assert A.shape == (n_bins, n_fft_pad) and Bm.shape == (n_bins, n_fft_pad)
    output_samples = (n_frames - 1) * hop + n_fft
    n_rows = n_frames + R - 1                    # hop-wide output rows touched

    # Row/frame tile: multiple of 8 sublanes, >= R so a frame spills at most one
    # tile ahead (single-depth carry), ~frame_tile rows so the per-step matmul
    # fills the MXU while spec/weights/out blocks stay well inside VMEM.
    frame_tile = _round_up(max(int(frame_tile), 8), 8)
    tm = min(frame_tile, _round_up(n_rows, 8))
    tm = max(tm, _round_up(R, 8), 8)
    G = -(-n_rows // tm)                         # grid extent along the OLA axis
    rows_total = G * tm

    real4 = real_stft.astype(jnp.float32)
    imag4 = imag_stft.astype(jnp.float32)
    if n_frames < tm:                            # only tiny inputs pay this pad
        pad = ((0, 0), (0, 0), (0, tm - n_frames), (0, 0))
        real4 = jnp.pad(real4, pad)
        imag4 = jnp.pad(imag4, pad)
    n_frames_arr = real4.shape[2]
    Gf = -(-n_frames_arr // tm)                  # frame tiles actually present

    A = jnp.asarray(A, jnp.float32)
    Bm = jnp.asarray(Bm, jnp.float32)

    # 1 / overlap-added window energy, laid out as (rows_total, hop) rows.  Built
    # with R shifted row adds (not an O(n_frames) python loop).  Rows past the
    # real output accumulate exactly 0 in the kernel, so their inv value is moot.
    w_pad = np.zeros((n_fft_pad,), np.float32)
    w_pad[:n_fft] = np.asarray(ola_window, np.float32)
    w_blk = w_pad.reshape(R, hop)
    ws = np.zeros((rows_total, hop), np.float32)
    for j in range(R):
        ws[j:j + n_frames] += w_blk[j]
    inv = jnp.asarray(1.0 / np.clip(ws, 1e-11, np.inf), jnp.float32)

    mask_frames = (rows_total != n_frames)
    kern = partial(_istft_ola_kernel, n_frames=n_frames, tm=tm, hop=hop, R=R,
                   mask_frames=mask_frames)

    # TODO(synk): when hop is not a multiple of 128, fold k hop-periods per output
    #   row to keep stores lane-dense; split hop columns across the two v7x
    #   TensorCores when batch == 1; accuracy-gated bf16 weights / K padded to 256.
    def run(single_buffer_weights):
        wmode = ({"pipeline_mode": pl.Buffered(1)} if single_buffer_weights else {})
        frame_map = lambda b, g: (b, 0, jnp.minimum(g, Gf - 1), 0)
        call = pl.pallas_call(
            kern,
            out_shape=jax.ShapeDtypeStruct((B, rows_total, hop), jnp.float32),
            grid_spec=pltpu.PrefetchScalarGridSpec(
                num_scalar_prefetch=0,
                grid=(B, G),
                in_specs=[
                    pl.BlockSpec((1, 1, tm, n_bins), frame_map),
                    pl.BlockSpec((1, 1, tm, n_bins), frame_map),
                    pl.BlockSpec((n_bins, n_fft_pad), lambda b, g: (0, 0), **wmode),
                    pl.BlockSpec((n_bins, n_fft_pad), lambda b, g: (0, 0), **wmode),
                    pl.BlockSpec((tm, hop), lambda b, g: (g, 0)),
                ],
                out_specs=pl.BlockSpec((1, tm, hop), lambda b, g: (b, g, 0)),
                scratch_shapes=[pltpu.VMEM((max(R - 1, 1), hop), jnp.float32)],
            ),
            compiler_params=pltpu.CompilerParams(
                dimension_semantics=("parallel", "arbitrary"),
                vmem_limit_bytes=_vmem_limit_bytes(),
            ),
        )
        return call(real4, imag4, A, Bm, inv)

    try:
        out = run(True)       # single-buffered constant weight operands
    except Exception:         # jax version without Buffered(1): default buffering
        out = run(False)

    y = out.reshape(B, rows_total * hop)         # contiguous row-major view
    start = n_fft // 2
    if length is not None:
        return y[:, start:start + length]
    return y[:, start:output_samples - start]


# ----------------------------------------------------------------------------
# Pure numpy reference (mirrors the PyTorch forward, uses the unfused Wr/Wi).
# ----------------------------------------------------------------------------
def istft_reference(real_stft, imag_stft, *, n_fft, hop_size, Wr, Wi, ola_window):
    real_stft = np.asarray(real_stft)
    imag_stft = np.asarray(imag_stft)
    B, _, n_frames, _ = real_stft.shape
    r = real_stft[:, 0].transpose(0, 2, 1)              # (B, n_bins, n_frames)
    im = imag_stft[:, 0].transpose(0, 2, 1)
    full_r = np.concatenate([r, r[:, 1:-1][:, ::-1]], axis=1)
    full_i = np.concatenate([im, -im[:, 1:-1][:, ::-1]], axis=1)
    # conv_real/conv_imag with kernel size 1: weight[o, i] = W[i, o]
    s = np.einsum('io,bit->bot', Wr, full_r) - np.einsum('io,bit->bot', Wi, full_i)
    out_len = (n_frames - 1) * hop_size + n_fft
    y = np.zeros((B, out_len), np.float64)
    wsum = np.zeros((out_len,), np.float64)
    for t in range(n_frames):
        y[:, t * hop_size:t * hop_size + n_fft] += s[:, :, t]
        wsum[t * hop_size:t * hop_size + n_fft] += ola_window
    wsum = np.clip(wsum, 1e-11, np.inf)
    y = y / wsum[None, :]
    return y[:, n_fft // 2: -(n_fft // 2)].astype(np.float32)


if __name__ == "__main__":
    # Small deterministic inputs consistent with the module: (B, 1, n_frames, n_fft//2+1)
    n_fft = 64
    n_bins = n_fft // 2 + 1
    key = jax.random.PRNGKey(0)
    k1, k2 = jax.random.split(key)

    # --- single-tile configs: hop | n_fft and hop not dividing n_fft -------------
    batch, n_frames = 2, 8
    real_stft = jax.random.normal(k1, (batch, 1, n_frames, n_bins), dtype=jnp.float32)
    imag_stft = jax.random.normal(k2, (batch, 1, n_frames, n_bins), dtype=jnp.float32)
    for hop_size in (16, 24):
        A, Bm, Wr, Wi, ola = make_istft_params(n_fft, hop_size, scaled=False)
        y = istft_forward(real_stft, imag_stft, n_fft=n_fft, hop_size=hop_size,
                          A=A, Bm=Bm, ola_window=ola)
        y = jax.block_until_ready(y)
        y_ref = istft_reference(real_stft, imag_stft, n_fft=n_fft, hop_size=hop_size,
                                Wr=Wr, Wi=Wi, ola_window=ola)
        assert y.shape == y_ref.shape, (hop_size, y.shape, y_ref.shape)
        np.testing.assert_allclose(np.asarray(y), y_ref, rtol=1e-4, atol=1e-4)

    # --- multi-tile configs: exercise the frame tiling + cross-tile carry --------
    n_frames2 = 40
    r2 = jax.random.normal(k1, (1, 1, n_frames2, n_bins), dtype=jnp.float32)
    i2 = jax.random.normal(k2, (1, 1, n_frames2, n_bins), dtype=jnp.float32)
    for hop_size in (16, 24):
        A, Bm, Wr, Wi, ola = make_istft_params(n_fft, hop_size, scaled=False)
        y = istft_forward(r2, i2, n_fft=n_fft, hop_size=hop_size, A=A, Bm=Bm,
                          ola_window=ola, frame_tile=16)   # force several tiles
        y = jax.block_until_ready(y)
        y_ref = istft_reference(r2, i2, n_fft=n_fft, hop_size=hop_size,
                                Wr=Wr, Wi=Wi, ola_window=ola)
        assert y.shape == y_ref.shape, (hop_size, y.shape, y_ref.shape)
        np.testing.assert_allclose(np.asarray(y), y_ref, rtol=1e-4, atol=1e-4)

    print("KERNEL_OK")
</pallas_src>

<mosaic_0001>
module attributes {stable_mosaic.version = 11 : i64} {
  func.func @_istft_ola_kernel(%arg0: i32, %arg1: i32, %arg2: memref<1x1x16x33xf32, #tpu.memory_space<vmem>>, %arg3: memref<1x1x16x33xf32, #tpu.memory_space<vmem>>, %arg4: memref<33x64xf32, #tpu.memory_space<vmem>>, %arg5: memref<33x64xf32, #tpu.memory_space<vmem>>, %arg6: memref<16x16xf32, #tpu.memory_space<vmem>>, %arg7: memref<1x16x16xf32, #tpu.memory_space<vmem>>, %arg8: memref<3x16xf32, #tpu.memory_space<vmem>>) attributes {dimension_semantics = [#tpu.dimension_semantics<parallel>, #tpu.dimension_semantics<arbitrary>], iteration_bounds = array<i64: 2, 1>, scalar_prefetch = 0 : i64, scratch_operands = 1 : i64, tpu.core_type = #tpu.core_type<tc>, window_params = [{transform_indices = @transform_0, window_bounds = array<i64: 1, 1, 16, 33>}, {transform_indices = @transform_1, window_bounds = array<i64: 1, 1, 16, 33>}, {pipeline_mode = #tpu.pipeline_mode<synchronous>, transform_indices = @transform_2, window_bounds = array<i64: 33, 64>}, {pipeline_mode = #tpu.pipeline_mode<synchronous>, transform_indices = @transform_3, window_bounds = array<i64: 33, 64>}, {transform_indices = @transform_4, window_bounds = array<i64: 16, 16>}, {transform_indices = @transform_5, window_bounds = array<i64: 1, 16, 16>}]} {
    %c0 = arith.constant 0 : index
    %c0_0 = arith.constant 0 : index
    %c0_1 = arith.constant 0 : index
    %c0_2 = arith.constant 0 : index
    %0 = vector.load %arg2[%c0, %c0_0, %c0_1, %c0_2] : memref<1x1x16x33xf32, #tpu.memory_space<vmem>>, vector<1x1x16x33xf32>
    %1 = vector.shape_cast %0 : vector<1x1x16x33xf32> to vector<16x33xf32>
    %c0_3 = arith.constant 0 : index
    %c0_4 = arith.constant 0 : index
    %c0_5 = arith.constant 0 : index
    %c0_6 = arith.constant 0 : index
    %2 = vector.load %arg3[%c0_3, %c0_4, %c0_5, %c0_6] : memref<1x1x16x33xf32, #tpu.memory_space<vmem>>, vector<1x1x16x33xf32>
    %3 = vector.shape_cast %2 : vector<1x1x16x33xf32> to vector<16x33xf32>
    %c16_i32 = arith.constant 16 : i32
    %4 = arith.muli %arg1, %c16_i32 : i32
    %c8_i32 = arith.constant 8 : i32
    %5 = arith.subi %c8_i32, %4 : i32
    %6 = tpu.iota {dimensions = array<i32: 0>} : vector<16x33xi32>
    %7 = vector.broadcast %5 : i32 to vector<16x33xi32>
    %8 = arith.cmpi slt, %6, %7 : vector<16x33xi32>
    %cst = arith.constant 0.000000e+00 : f32
    %9 = vector.broadcast %cst : f32 to vector<16x33xf32>
    %10 = arith.select %8, %1, %9 : vector<16x33xi1>, vector<16x33xf32>
    %cst_7 = arith.constant 0.000000e+00 : f32
    %11 = vector.broadcast %cst_7 : f32 to vector<16x33xf32>
    %12 = arith.select %8, %3, %11 : vector<16x33xi1>, vector<16x33xf32>
    %c0_8 = arith.constant 0 : index
    %c0_9 = arith.constant 0 : index
    %13 = vector.load %arg4[%c0_8, %c0_9] : memref<33x64xf32, #tpu.memory_space<vmem>>, vector<33x64xf32>
    %cst_10 = arith.constant dense<0.000000e+00> : vector<16x64xf32>
    %14 = tpu.matmul %10, %13, %cst_10 {dimension_numbers = #tpu.dot_dimension_numbers<[1], [0], [0], [1], [0, 0, 1, 1], [], []>} : vector<16x33xf32>, vector<33x64xf32>, vector<16x64xf32> -> vector<16x64xf32>
    %c0_11 = arith.constant 0 : index
    %c0_12 = arith.constant 0 : index
    %15 = vector.load %arg5[%c0_11, %c0_12] : memref<33x64xf32, #tpu.memory_space<vmem>>, vector<33x64xf32>
    %cst_13 = arith.constant dense<0.000000e+00> : vector<16x64xf32>
    %16 = tpu.matmul %12, %15, %cst_13 {dimension_numbers = #tpu.dot_dimension_numbers<[1], [0], [0], [1], [0, 0, 1, 1], [], []>} : vector<16x33xf32>, vector<33x64xf32>, vector<16x64xf32> -> vector<16x64xf32>
    %17 = arith.addf %14, %16 : vector<16x64xf32>
    %c0_i32 = arith.constant 0 : i32
    %18 = arith.cmpi eq, %arg1, %c0_i32 : i32
    %19 = arith.extui %18 : i1 to i32
    %c0_i32_14 = arith.constant 0 : i32
    %20 = arith.cmpi ne, %19, %c0_i32_14 : i32
    scf.if %20 {
      %cst_45 = arith.constant 0.000000e+00 : f32
      %79 = vector.broadcast %cst_45 : f32 to vector<3x16xf32>
      %c0_46 = arith.constant 0 : index
      %c0_47 = arith.constant 0 : index
      %80 = vector.load %arg8[%c0_46, %c0_47] : memref<3x16xf32, #tpu.memory_space<vmem>>, vector<3x16xf32>
      tpu.vector_store %arg8[%c0_46, %c0_47], %79 {strides = array<i32>} : memref<3x16xf32, #tpu.memory_space<vmem>>, vector<3x16xf32>,
    } else {
    }
    %c0_15 = arith.constant 0 : index
    %c0_16 = arith.constant 0 : index
    %21 = vector.load %arg8[%c0_15, %c0_16] : memref<3x16xf32, #tpu.memory_space<vmem>>, vector<3x16xf32>
    %22 = vector.extract_strided_slice %17 {offsets = [0, 0], sizes = [16, 16], strides = [1, 1]} : vector<16x64xf32> to vector<16x16xf32>
    %23 = tpu.iota {dimensions = array<i32: 0>} : vector<16x16xi32>
    %24 = tpu.iota {dimensions = array<i32: 0>} : vector<3x16xi32>
    %cst_17 = arith.constant 0.000000e+00 : f32
    %25 = vector.broadcast %cst_17 : f32 to vector<3x16xf32>
    %26 = vector.extract_strided_slice %17 {offsets = [0, 16], sizes = [16, 16], strides = [1, 1]} : vector<16x64xf32> to vector<16x16xf32>
    %c1_i32 = arith.constant 1 : i32
    %27 = tpu.dynamic_rotate %26 by %c1_i32 dim 0 : vector<16x16xf32>, i32 -> vector<16x16xf32>
    %c1_i32_18 = arith.constant 1 : i32
    %28 = vector.broadcast %c1_i32_18 : i32 to vector<16x16xi32>
    %29 = arith.cmpi sge, %23, %28 : vector<16x16xi32>
    %cst_19 = arith.constant 0.000000e+00 : f32
    %30 = vector.broadcast %cst_19 : f32 to vector<16x16xf32>
    %31 = arith.select %29, %27, %30 : vector<16x16xi1>, vector<16x16xf32>
    %32 = arith.addf %22, %31 : vector<16x16xf32>
    %c1_i32_20 = arith.constant 1 : i32
    %33 = vector.broadcast %c1_i32_20 : i32 to vector<3x16xi32>
    %34 = arith.cmpi slt, %24, %33 : vector<3x16xi32>
    %35 = vector.extract_strided_slice %27 {offsets = [0, 0], sizes = [3, 16], strides = [1, 1]} : vector<16x16xf32> to vector<3x16xf32>
    %cst_21 = arith.constant 0.000000e+00 : f32
    %36 = vector.broadcast %cst_21 : f32 to vector<3x16xf32>
    %37 = arith.select %34, %35, %36 : vector<3x16xi1>, vector<3x16xf32>
    %38 = arith.addf %25, %37 : vector<3x16xf32>
    %39 = vector.extract_strided_slice %17 {offsets = [0, 32], sizes = [16, 16], strides = [1, 1]} : vector<16x64xf32> to vector<16x16xf32>
    %c2_i32 = arith.constant 2 : i32
    %40 = tpu.dynamic_rotate %39 by %c2_i32 dim 0 : vector<16x16xf32>, i32 -> vector<16x16xf32>
    %c2_i32_22 = arith.constant 2 : i32
    %41 = vector.broadcast %c2_i32_22 : i32 to vector<16x16xi32>
    %42 = arith.cmpi sge, %23, %41 : vector<16x16xi32>
    %cst_23 = arith.constant 0.000000e+00 : f32
    %43 = vector.broadcast %cst_23 : f32 to vector<16x16xf32>
    %44 = arith.select %42, %40, %43 : vector<16x16xi1>, vector<16x16xf32>
    %45 = arith.addf %32, %44 : vector<16x16xf32>
    %c2_i32_24 = arith.constant 2 : i32
    %46 = vector.broadcast %c2_i32_24 : i32 to vector<3x16xi32>
    %47 = arith.cmpi slt, %24, %46 : vector<3x16xi32>
    %48 = vector.extract_strided_slice %40 {offsets = [0, 0], sizes = [3, 16], strides = [1, 1]} : vector<16x16xf32> to vector<3x16xf32>
    %cst_25 = arith.constant 0.000000e+00 : f32
    %49 = vector.broadcast %cst_25 : f32 to vector<3x16xf32>
    %50 = arith.select %47, %48, %49 : vector<3x16xi1>, vector<3x16xf32>
    %51 = arith.addf %38, %50 : vector<3x16xf32>
    %52 = vector.extract_strided_slice %17 {offsets = [0, 48], sizes = [16, 16], strides = [1, 1]} : vector<16x64xf32> to vector<16x16xf32>
    %c3_i32 = arith.constant 3 : i32
    %53 = tpu.dynamic_rotate %52 by %c3_i32 dim 0 : vector<16x16xf32>, i32 -> vector<16x16xf32>
    %c3_i32_26 = arith.constant 3 : i32
    %54 = vector.broadcast %c3_i32_26 : i32 to vector<16x16xi32>
    %55 = arith.cmpi sge, %23, %54 : vector<16x16xi32>
    %cst_27 = arith.constant 0.000000e+00 : f32
    %56 = vector.broadcast %cst_27 : f32 to vector<16x16xf32>
    %57 = arith.select %55, %53, %56 : vector<16x16xi1>, vector<16x16xf32>
    %58 = arith.addf %45, %57 : vector<16x16xf32>
    %c3_i32_28 = arith.constant 3 : i32
    %59 = vector.broadcast %c3_i32_28 : i32 to vector<3x16xi32>
    %60 = arith.cmpi slt, %24, %59 : vector<3x16xi32>
    %61 = vector.extract_strided_slice %53 {offsets = [0, 0], sizes = [3, 16], strides = [1, 1]} : vector<16x16xf32> to vector<3x16xf32>
    %cst_29 = arith.constant 0.000000e+00 : f32
    %62 = vector.broadcast %cst_29 : f32 to vector<3x16xf32>
    %63 = arith.select %60, %61, %62 : vector<3x16xi1>, vector<3x16xf32>
    %64 = arith.addf %51, %63 : vector<3x16xf32>
    %c0_30 = arith.constant 0 : index
    %c0_31 = arith.constant 0 : index
    %65 = vector.load %arg8[%c0_30, %c0_31] : memref<3x16xf32, #tpu.memory_space<vmem>>, vector<3x16xf32>
    tpu.vector_store %arg8[%c0_30, %c0_31], %64 {strides = array<i32>} : memref<3x16xf32, #tpu.memory_space<vmem>>, vector<3x16xf32>,
    %c0_32 = arith.constant 0 : index
    %c0_33 = arith.constant 0 : index
    %66 = vector.load %arg6[%c0_32, %c0_33] : memref<16x16xf32, #tpu.memory_space<vmem>>, vector<16x16xf32>
    %67 = arith.mulf %58, %66 : vector<16x16xf32>
    %c0_34 = arith.constant 0 : index
    %c0_35 = arith.constant 0 : index
    %c0_36 = arith.constant 0 : index
    %68 = vector.load %arg7[%c0_34, %c0_35, %c0_36] : memref<1x16x16xf32, #tpu.memory_space<vmem>>, vector<1x16x16xf32>
    %69 = vector.shape_cast %68 : vector<1x16x16xf32> to vector<16x16xf32>
    %70 = vector.shape_cast %67 : vector<16x16xf32> to vector<1x16x16xf32>
    tpu.vector_store %arg7[%c0_34, %c0_35, %c0_36], %70 {strides = array<i32>} : memref<1x16x16xf32, #tpu.memory_space<vmem>>, vector<1x16x16xf32>,
    %c0_37 = arith.constant 0 : index
    %c0_38 = arith.constant 0 : index
    %c0_39 = arith.constant 0 : index
    %71 = vector.load %arg7[%c0_37, %c0_38, %c0_39] : memref<1x16x16xf32, #tpu.memory_space<vmem>>, vector<1x3x16xf32>
    %72 = vector.shape_cast %71 : vector<1x3x16xf32> to vector<3x16xf32>
    %c0_40 = arith.constant 0 : index
    %c0_41 = arith.constant 0 : index
    %73 = vector.load %arg6[%c0_40, %c0_41] : memref<16x16xf32, #tpu.memory_space<vmem>>, vector<3x16xf32>
    %74 = arith.mulf %21, %73 : vector<3x16xf32>
    %75 = arith.addf %72, %74 : vector<3x16xf32>
    %c0_42 = arith.constant 0 : index
    %c0_43 = arith.constant 0 : index
    %c0_44 = arith.constant 0 : index
    %76 = vector.load %arg7[%c0_42, %c0_43, %c0_44] : memref<1x16x16xf32, #tpu.memory_space<vmem>>, vector<1x3x16xf32>
    %77 = vector.shape_cast %76 : vector<1x3x16xf32> to vector<3x16xf32>
    %78 = vector.shape_cast %75 : vector<3x16xf32> to vector<1x3x16xf32>
    tpu.vector_store %arg7[%c0_42, %c0_43, %c0_44], %78 {strides = array<i32>} : memref<1x16x16xf32, #tpu.memory_space<vmem>>, vector<1x3x16xf32>,
    return
  }
  func.func @transform_0(%arg0: i32, %arg1: i32) -> (i32, i32, i32, i32) {
    %c0_i32 = arith.constant 0 : i32
    %0 = arith.minsi %arg1, %c0_i32 : i32
    %c0_i32_0 = arith.constant 0 : i32
    %c0_i32_1 = arith.constant 0 : i32
    %c0_i32_2 = arith.constant 0 : i32
    return %arg0, %c0_i32_0, %0, %c0_i32_1 : i32, i32, i32, i32
  }
  func.func @transform_1(%arg0: i32, %arg1: i32) -> (i32, i32, i32, i32) {
    %c0_i32 = arith.constant 0 : i32
    %0 = arith.minsi %arg1, %c0_i32 : i32
    %c0_i32_0 = arith.constant 0 : i32
    %c0_i32_1 = arith.constant 0 : i32
    %c0_i32_2 = arith.constant 0 : i32
    return %arg0, %c0_i32_0, %0, %c0_i32_1 : i32, i32, i32, i32
  }
  func.func @transform_2(%arg0: i32, %arg1: i32) -> (i32, i32) {
    %c0_i32 = arith.constant 0 : i32
    %c0_i32_0 = arith.constant 0 : i32
    %c0_i32_1 = arith.constant 0 : i32
    return %c0_i32, %c0_i32_0 : i32, i32
  }
  func.func @transform_3(%arg0: i32, %arg1: i32) -> (i32, i32) {
    %c0_i32 = arith.constant 0 : i32
    %c0_i32_0 = arith.constant 0 : i32
    %c0_i32_1 = arith.constant 0 : i32
    return %c0_i32, %c0_i32_0 : i32, i32
  }
  func.func @transform_4(%arg0: i32, %arg1: i32) -> (i32, i32) {
    %c0_i32 = arith.constant 0 : i32
    %c0_i32_0 = arith.constant 0 : i32
    return %arg1, %c0_i32 : i32, i32
  }
  func.func @transform_5(%arg0: i32, %arg1: i32) -> (i32, i32, i32) {
    %c0_i32 = arith.constant 0 : i32
    %c0_i32_0 = arith.constant 0 : i32
    return %arg0, %arg1, %c0_i32 : i32, i32, i32
  }
}

module attributes {stable_mosaic.version = 11 : i64} {
  func.func @_istft_ola_kernel(%arg0: i32, %arg1: i32, %arg2: memref<1x1x16x33xf32, #tpu.memory_space<vmem>>, %arg3: memref<1x1x16x33xf32, #tpu.memory_space<vmem>>, %arg4: memref<33x64xf32, #tpu.memory_space<vmem>>, %arg5: memref<33x64xf32, #tpu.memory_space<vmem>>, %arg6: memref<16x16xf32, #tpu.memory_space<vmem>>, %arg7: memref<1x16x16xf32, #tpu.memory_space<vmem>>, %arg8: memref<3x16xf32, #tpu.memory_space<vmem>>) attributes {dimension_semantics = [#tpu.dimension_semantics<parallel>, #tpu.dimension_semantics<arbitrary>], iteration_bounds = array<i64: 2, 1>, scalar_prefetch = 0 : i64, scratch_operands = 1 : i64, tpu.core_type = #tpu.core_type<tc>, window_params = [{transform_indices = @transform_0, window_bounds = array<i64: 1, 1, 16, 33>}, {transform_indices = @transform_1, window_bounds = array<i64: 1, 1, 16, 33>}, {pipeline_mode = #tpu.pipeline_mode<synchronous>, transform_indices = @transform_2, window_bounds = array<i64: 33, 64>}, {pipeline_mode = #tpu.pipeline_mode<synchronous>, transform_indices = @transform_3, window_bounds = array<i64: 33, 64>}, {transform_indices = @transform_4, window_bounds = array<i64: 16, 16>}, {transform_indices = @transform_5, window_bounds = array<i64: 1, 16, 16>}]} {
    %c0 = arith.constant 0 : index
    %c0_0 = arith.constant 0 : index
    %c0_1 = arith.constant 0 : index
    %c0_2 = arith.constant 0 : index
    %0 = vector.load %arg2[%c0, %c0_0, %c0_1, %c0_2] : memref<1x1x16x33xf32, #tpu.memory_space<vmem>>, vector<1x1x16x33xf32>
    %1 = vector.shape_cast %0 : vector<1x1x16x33xf32> to vector<16x33xf32>
    %c0_3 = arith.constant 0 : index
    %c0_4 = arith.constant 0 : index
    %c0_5 = arith.constant 0 : index
    %c0_6 = arith.constant 0 : index
    %2 = vector.load %arg3[%c0_3, %c0_4, %c0_5, %c0_6] : memref<1x1x16x33xf32, #tpu.memory_space<vmem>>, vector<1x1x16x33xf32>
    %3 = vector.shape_cast %2 : vector<1x1x16x33xf32> to vector<16x33xf32>
    %c16_i32 = arith.constant 16 : i32
    %4 = arith.muli %arg1, %c16_i32 : i32
    %c8_i32 = arith.constant 8 : i32
    %5 = arith.subi %c8_i32, %4 : i32
    %6 = tpu.iota {dimensions = array<i32: 0>} : vector<16x33xi32>
    %7 = vector.broadcast %5 : i32 to vector<16x33xi32>
    %8 = arith.cmpi slt, %6, %7 : vector<16x33xi32>
    %cst = arith.constant 0.000000e+00 : f32
    %9 = vector.broadcast %cst : f32 to vector<16x33xf32>
    %10 = arith.select %8, %1, %9 : vector<16x33xi1>, vector<16x33xf32>
    %cst_7 = arith.constant 0.000000e+00 : f32
    %11 = vector.broadcast %cst_7 : f32 to vector<16x33xf32>
    %12 = arith.select %8, %3, %11 : vector<16x33xi1>, vector<16x33xf32>
    %c0_8 = arith.constant 0 : index
    %c0_9 = arith.constant 0 : index
    %13 = vector.load %arg4[%c0_8, %c0_9] : memref<33x64xf32, #tpu.memory_space<vmem>>, vector<33x64xf32>
    %cst_10 = arith.constant dense<0.000000e+00> : vector<16x64xf32>
    %14 = tpu.matmul %10, %13, %cst_10 {dimension_numbers = #tpu.dot_dimension_numbers<[1], [0], [0], [1], [0, 0, 1, 1], [], []>} : vector<16x33xf32>, vector<33x64xf32>, vector<16x64xf32> -> vector<16x64xf32>
    %c0_11 = arith.constant 0 : index
    %c0_12 = arith.constant 0 : index
    %15 = vector.load %arg5[%c0_11, %c0_12] : memref<33x64xf32, #tpu.memory_space<vmem>>, vector<33x64xf32>
    %cst_13 = arith.constant dense<0.000000e+00> : vector<16x64xf32>
    %16 = tpu.matmul %12, %15, %cst_13 {dimension_numbers = #tpu.dot_dimension_numbers<[1], [0], [0], [1], [0, 0, 1, 1], [], []>} : vector<16x33xf32>, vector<33x64xf32>, vector<16x64xf32> -> vector<16x64xf32>
    %17 = arith.addf %14, %16 : vector<16x64xf32>
    %c0_i32 = arith.constant 0 : i32
    %18 = arith.cmpi eq, %arg1, %c0_i32 : i32
    %19 = arith.extui %18 : i1 to i32
    %c0_i32_14 = arith.constant 0 : i32
    %20 = arith.cmpi ne, %19, %c0_i32_14 : i32
    scf.if %20 {
      %cst_45 = arith.constant 0.000000e+00 : f32
      %79 = vector.broadcast %cst_45 : f32 to vector<3x16xf32>
      %c0_46 = arith.constant 0 : index
      %c0_47 = arith.constant 0 : index
      %80 = vector.load %arg8[%c0_46, %c0_47] : memref<3x16xf32, #tpu.memory_space<vmem>>, vector<3x16xf32>
      tpu.vector_store %arg8[%c0_46, %c0_47], %79 {strides = array<i32>} : memref<3x16xf32, #tpu.memory_space<vmem>>, vector<3x16xf32>,
    } else {
    }
    %c0_15 = arith.constant 0 : index
    %c0_16 = arith.constant 0 : index
    %21 = vector.load %arg8[%c0_15, %c0_16] : memref<3x16xf32, #tpu.memory_space<vmem>>, vector<3x16xf32>
    %22 = vector.extract_strided_slice %17 {offsets = [0, 0], sizes = [16, 16], strides = [1, 1]} : vector<16x64xf32> to vector<16x16xf32>
    %23 = tpu.iota {dimensions = array<i32: 0>} : vector<16x16xi32>
    %24 = tpu.iota {dimensions = array<i32: 0>} : vector<3x16xi32>
    %cst_17 = arith.constant 0.000000e+00 : f32
    %25 = vector.broadcast %cst_17 : f32 to vector<3x16xf32>
    %26 = vector.extract_strided_slice %17 {offsets = [0, 16], sizes = [16, 16], strides = [1, 1]} : vector<16x64xf32> to vector<16x16xf32>
    %c1_i32 = arith.constant 1 : i32
    %27 = tpu.dynamic_rotate %26 by %c1_i32 dim 0 : vector<16x16xf32>, i32 -> vector<16x16xf32>
    %c1_i32_18 = arith.constant 1 : i32
    %28 = vector.broadcast %c1_i32_18 : i32 to vector<16x16xi32>
    %29 = arith.cmpi sge, %23, %28 : vector<16x16xi32>
    %cst_19 = arith.constant 0.000000e+00 : f32
    %30 = vector.broadcast %cst_19 : f32 to vector<16x16xf32>
    %31 = arith.select %29, %27, %30 : vector<16x16xi1>, vector<16x16xf32>
    %32 = arith.addf %22, %31 : vector<16x16xf32>
    %c1_i32_20 = arith.constant 1 : i32
    %33 = vector.broadcast %c1_i32_20 : i32 to vector<3x16xi32>
    %34 = arith.cmpi slt, %24, %33 : vector<3x16xi32>
    %35 = vector.extract_strided_slice %27 {offsets = [0, 0], sizes = [3, 16], strides = [1, 1]} : vector<16x16xf32> to vector<3x16xf32>
    %cst_21 = arith.constant 0.000000e+00 : f32
    %36 = vector.broadcast %cst_21 : f32 to vector<3x16xf32>
    %37 = arith.select %34, %35, %36 : vector<3x16xi1>, vector<3x16xf32>
    %38 = arith.addf %25, %37 : vector<3x16xf32>
    %39 = vector.extract_strided_slice %17 {offsets = [0, 32], sizes = [16, 16], strides = [1, 1]} : vector<16x64xf32> to vector<16x16xf32>
    %c2_i32 = arith.constant 2 : i32
    %40 = tpu.dynamic_rotate %39 by %c2_i32 dim 0 : vector<16x16xf32>, i32 -> vector<16x16xf32>
    %c2_i32_22 = arith.constant 2 : i32
    %41 = vector.broadcast %c2_i32_22 : i32 to vector<16x16xi32>
    %42 = arith.cmpi sge, %23, %41 : vector<16x16xi32>
    %cst_23 = arith.constant 0.000000e+00 : f32
    %43 = vector.broadcast %cst_23 : f32 to vector<16x16xf32>
    %44 = arith.select %42, %40, %43 : vector<16x16xi1>, vector<16x16xf32>
    %45 = arith.addf %32, %44 : vector<16x16xf32>
    %c2_i32_24 = arith.constant 2 : i32
    %46 = vector.broadcast %c2_i32_24 : i32 to vector<3x16xi32>
    %47 = arith.cmpi slt, %24, %46 : vector<3x16xi32>
    %48 = vector.extract_strided_slice %40 {offsets = [0, 0], sizes = [3, 16], strides = [1, 1]} : vector<16x16xf32> to vector<3x16xf32>
    %cst_25 = arith.constant 0.000000e+00 : f32
    %49 = vector.broadcast %cst_25 : f32 to vector<3x16xf32>
    %50 = arith.select %47, %48, %49 : vector<3x16xi1>, vector<3x16xf32>
    %51 = arith.addf %38, %50 : vector<3x16xf32>
    %52 = vector.extract_strided_slice %17 {offsets = [0, 48], sizes = [16, 16], strides = [1, 1]} : vector<16x64xf32> to vector<16x16xf32>
    %c3_i32 = arith.constant 3 : i32
    %53 = tpu.dynamic_rotate %52 by %c3_i32 dim 0 : vector<16x16xf32>, i32 -> vector<16x16xf32>
    %c3_i32_26 = arith.constant 3 : i32
    %54 = vector.broadcast %c3_i32_26 : i32 to vector<16x16xi32>
    %55 = arith.cmpi sge, %23, %54 : vector<16x16xi32>
    %cst_27 = arith.constant 0.000000e+00 : f32
    %56 = vector.broadcast %cst_27 : f32 to vector<16x16xf32>
    %57 = arith.select %55, %53, %56 : vector<16x16xi1>, vector<16x16xf32>
    %58 = arith.addf %45, %57 : vector<16x16xf32>
    %c3_i32_28 = arith.constant 3 : i32
    %59 = vector.broadcast %c3_i32_28 : i32 to vector<3x16xi32>
    %60 = arith.cmpi slt, %24, %59 : vector<3x16xi32>
    %61 = vector.extract_strided_slice %53 {offsets = [0, 0], sizes = [3, 16], strides = [1, 1]} : vector<16x16xf32> to vector<3x16xf32>
    %cst_29 = arith.constant 0.000000e+00 : f32
    %62 = vector.broadcast %cst_29 : f32 to vector<3x16xf32>
    %63 = arith.select %60, %61, %62 : vector<3x16xi1>, vector<3x16xf32>
    %64 = arith.addf %51, %63 : vector<3x16xf32>
    %c0_30 = arith.constant 0 : index
    %c0_31 = arith.constant 0 : index
    %65 = vector.load %arg8[%c0_30, %c0_31] : memref<3x16xf32, #tpu.memory_space<vmem>>, vector<3x16xf32>
    tpu.vector_store %arg8[%c0_30, %c0_31], %64 {strides = array<i32>} : memref<3x16xf32, #tpu.memory_space<vmem>>, vector<3x16xf32>,
    %c0_32 = arith.constant 0 : index
    %c0_33 = arith.constant 0 : index
    %66 = vector.load %arg6[%c0_32, %c0_33] : memref<16x16xf32, #tpu.memory_space<vmem>>, vector<16x16xf32>
    %67 = arith.mulf %58, %66 : vector<16x16xf32>
    %c0_34 = arith.constant 0 : index
    %c0_35 = arith.constant 0 : index
    %c0_36 = arith.constant 0 : index
    %68 = vector.load %arg7[%c0_34, %c0_35, %c0_36] : memref<1x16x16xf32, #tpu.memory_space<vmem>>, vector<1x16x16xf32>
    %69 = vector.shape_cast %68 : vector<1x16x16xf32> to vector<16x16xf32>
    %70 = vector.shape_cast %67 : vector<16x16xf32> to vector<1x16x16xf32>
    tpu.vector_store %arg7[%c0_34, %c0_35, %c0_36], %70 {strides = array<i32>} : memref<1x16x16xf32, #tpu.memory_space<vmem>>, vector<1x16x16xf32>,
    %c0_37 = arith.constant 0 : index
    %c0_38 = arith.constant 0 : index
    %c0_39 = arith.constant 0 : index
    %71 = vector.load %arg7[%c0_37, %c0_38, %c0_39] : memref<1x16x16xf32, #tpu.memory_space<vmem>>, vector<1x3x16xf32>
    %72 = vector.shape_cast %71 : vector<1x3x16xf32> to vector<3x16xf32>
    %c0_40 = arith.constant 0 : index
    %c0_41 = arith.constant 0 : index
    %73 = vector.load %arg6[%c0_40, %c0_41] : memref<16x16xf32, #tpu.memory_space<vmem>>, vector<3x16xf32>
    %74 = arith.mulf %21, %73 : vector<3x16xf32>
    %75 = arith.addf %72, %74 : vector<3x16xf32>
    %c0_42 = arith.constant 0 : index
    %c0_43 = arith.constant 0 : index
    %c0_44 = arith.constant 0 : index
    %76 = vector.load %arg7[%c0_42, %c0_43, %c0_44] : memref<1x16x16xf32, #tpu.memory_space<vmem>>, vector<1x3x16xf32>
    %77 = vector.shape_cast %76 : vector<1x3x16xf32> to vector<3x16xf32>
    %78 = vector.shape_cast %75 : vector<3x16xf32> to vector<1x3x16xf32>
    tpu.vector_store %arg7[%c0_42, %c0_43, %c0_44], %78 {strides = array<i32>} : memref<1x16x16xf32, #tpu.memory_space<vmem>>, vector<1x3x16xf32>,
    return
  }
  func.func @transform_0(%arg0: i32, %arg1: i32) -> (i32, i32, i32, i32) {
    %c0_i32 = arith.constant 0 : i32
    %0 = arith.minsi %arg1, %c0_i32 : i32
    %c0_i32_0 = arith.constant 0 : i32
    %c0_i32_1 = arith.constant 0 : i32
    %c0_i32_2 = arith.constant 0 : i32
    return %arg0, %c0_i32_0, %0, %c0_i32_1 : i32, i32, i32, i32
  }
  func.func @transform_1(%arg0: i32, %arg1: i32) -> (i32, i32, i32, i32) {
    %c0_i32 = arith.constant 0 : i32
    %0 = arith.minsi %arg1, %c0_i32 : i32
    %c0_i32_0 = arith.constant 0 : i32
    %c0_i32_1 = arith.constant 0 : i32
    %c0_i32_2 = arith.constant 0 : i32
    return %arg0, %c0_i32_0, %0, %c0_i32_1 : i32, i32, i32, i32
  }
  func.func @transform_2(%arg0: i32, %arg1: i32) -> (i32, i32) {
    %c0_i32 = arith.constant 0 : i32
    %c0_i32_0 = arith.constant 0 : i32
    %c0_i32_1 = arith.constant 0 : i32
    return %c0_i32, %c0_i32_0 : i32, i32
  }
  func.func @transform_3(%arg0: i32, %arg1: i32) -> (i32, i32) {
    %c0_i32 = arith.constant 0 : i32
    %c0_i32_0 = arith.constant 0 : i32
    %c0_i32_1 = arith.constant 0 : i32
    return %c0_i32, %c0_i32_0 : i32, i32
  }
  func.func @transform_4(%arg0: i32, %arg1: i32) -> (i32, i32) {
    %c0_i32 = arith.constant 0 : i32
    %c0_i32_0 = arith.constant 0 : i32
    return %arg1, %c0_i32 : i32, i32
  }
  func.func @transform_5(%arg0: i32, %arg1: i32) -> (i32, i32, i32) {
    %c0_i32 = arith.constant 0 : i32
    %c0_i32_0 = arith.constant 0 : i32
    return %arg0, %arg1, %c0_i32 : i32, i32, i32
  }
}

</mosaic_0001>

<llo_original>
// kernel: tpu_custom_call.1
$region0: #{tpu_custom_call.1}
  #allocation0 [shape = 'u32[]', space=smem, size = 0x4, offset = 0x4, fixed_abs, tag = 'smem constant byte address 0x4 - core index']
  #allocation1 [shape = 'u32[72,128]{1,0:T(1,128)}', space=vmem, size = 0x9000, scoped, tag = 'internal scratch']
  #allocation2 [shape = 'f32[3,16]{1,0:T(4,128)}', space=vmem, size = 0x800, scoped, tag = 'scratch operand']
  %s0 = inlined_call_operand.hbm [shape: f32[2,1,16,33], index: 0, kind: input, shape index: {}]
  %s1 = inlined_call_operand.hbm [shape: f32[2,1,16,33], index: 1, kind: input, shape index: {}]
  %s2 = inlined_call_operand.hbm [shape: f32[33,64], index: 2, kind: input, shape index: {}]
  %s3 = inlined_call_operand.hbm [shape: f32[33,64], index: 3, kind: input, shape index: {}]
  %s4 = inlined_call_operand.hbm [shape: f32[16,16], index: 4, kind: input, shape index: {}]
  %s5 = inlined_call_operand.hbm [shape: f32[2,16,16], index: 5, kind: output, shape index: {}]
  %s6 = sld [smem:[#allocation0]]
  $region77: #{tpu_custom_call.1} parent=0
    _
  %s8 = ssub.s32 1, %s6
  %s9 = scalar_select 0, %s8, %s6
  $region1: #{tpu_custom_call.1} parent=0
    #allocation3 [shape = 'u8[16384]{0}', space=vmem, size = 0x4000, scoped, tag = 'input window, operand 0']
    #allocation4 [shape = 's32[2]{0}', space=sflag, size = 0x8, scoped, tag = 'scoped memory for tpu_custom_call.1']
    #allocation5 [shape = 's32[2]{0}', space=sflag, size = 0x8, scoped, tag = 'scoped memory for tpu_custom_call.1']
    #allocation6 [shape = 'u8[16384]{0}', space=vmem, size = 0x4000, scoped, tag = 'input window, operand 1']
    #allocation7 [shape = 's32[2]{0}', space=sflag, size = 0x8, scoped, tag = 'scoped memory for tpu_custom_call.1']
    #allocation8 [shape = 'u8[20480]{0}', space=vmem, size = 0x5000, scoped, tag = 'input window, operand 2, single buffered']
    #allocation9 [shape = 'u8[20480]{0}', space=vmem, size = 0x5000, scoped, tag = 'input window, operand 3, single buffered']
    #allocation10 [shape = 's32[1]{0}', space=sflag, size = 0x4, scoped, tag = 'scoped memory for tpu_custom_call.1']
    #allocation11 [shape = 'u8[8192]{0}', space=vmem, size = 0x2000, scoped, tag = 'input window, operand 4, single buffered']
    #allocation12 [shape = 'u8[16384]{0}', space=vmem, size = 0x4000, scoped, tag = 'output window, operand 0']
    %10 = vsyncpa [#allocation4], 0
    %s11 = scalar_lea.sflag [#allocation4], 1
    %12 = vsyncpa %s11, 0
    %13 = vsyncpa [#allocation7], 0
    %s14 = scalar_lea.sflag [#allocation7], 1
    %15 = vsyncpa %s14, 0
    %16 = vsyncpa [#allocation10], 0
    %17 = vsyncpa [#allocation5], 0
    %s18 = scalar_lea.sflag [#allocation5], 1
    %19 = vsyncpa %s18, 0
    loop: start=0, step=1, limit=4
    $region2: #{tpu_custom_call.1} parent=1 // loop_pre_header
      _
    $region3: #{tpu_custom_call.1} parent=1 // loop_header
      %s21 = sphi 0, %s25
      %p22 = scmp.ge.s32.totalorder %s21, 4
      %s28 = sphi 0, %s40
      %s29 = sphi 0, %s36
      %s30 = sphi 0, %s28
      %s31 = sphi 0, %s29
      %s32 = sphi 0, %s30
      %s33 = sphi 0, %s31
      %s49 = sphi 0, %s51
      %s52 = sphi 0, %s49
      %s53 = sphi 0, %s52
      %s69 = sphi 0, %s53
      %s81 = sphi 0, %s83
      %s84 = sphi 0, %s81
      %s85 = sphi 0, %s84
      %s101 = sphi 0, %s85
      %s105 = sphi 0, %s105
      %s107 = sphi 0, %s105
      %s108 = sphi 0, %s107
      %s122 = sphi 0, %s108
      %s126 = sphi 0, %s126
      %s128 = sphi 0, %s126
      %s129 = sphi 0, %s128
      %s143 = sphi 0, %s129
      %s149 = sphi 0, %s151
      %s152 = sphi 0, %s149
      %s153 = sphi 0, %s152
      %s169 = sphi 0, %s153
      %s177 = sphi 0, %s179
      %s180 = sphi 0, %s177
      %s181 = sphi 0, %s180
      %s197 = sphi 0, %s181
    $region4: #{tpu_custom_call.1} parent=1 // loop_header_branch
      %24 = sbr.rel (%p22) target = $region8
    $region5: #{tpu_custom_call.1} parent=1 // loop_body
      %s26 = ssub.s32 %s21, 1
      %s27 = ssub.s32 %s21, 2
      %s34 = sadd.s32 1, %s29
      %p35 = scmp.ge.s32.totalorder %s34, 1
      %s36 = scalar_select %p35, 0, %s34
      %s37 = sadd.s32 1, %s28
      %s38 = scalar_select %p35, %s37, %s28
      %p39 = scmp.ge.s32.totalorder %s38, 2
      %s40 = scalar_select %p39, 0, %s38
      %p41 = scmp.lt.s32.totalorder %s29, 0
      %s42 = scalar_select %p41, %s29, 0
      %p43 = scmp.lt.s32.totalorder %s36, 0
      %s44 = scalar_select %p43, %s36, 0
      %s45 = ssub.s32 %s28, %s40
      %s46 = ssub.s32 %s42, %s44
      %s47 = sor.u32 %s45, %s46
      %p48 = scmp.eq.s32.totalorder %s47, 0
      %s50 = sadd.s32 %s49, 1
      %s51 = scalar_select %p48, %s49, %s50
      %p54 = pneg %p48
      %p55 = scmp.eq.s32.totalorder %s21, 1
      %p56 = por %p54, %p55
      %p57 = scmp.ne.s32.totalorder %s49, %s52
      %p58 = scmp.eq.s32.totalorder %s21, 0
      %p59 = por %p57, %p58
      %p60 = scmp.ne.s32.totalorder %s49, %s52
      %p61 = scmp.eq.s32.totalorder %s26, 1
      %p62 = por %p60, %p61
      %p63 = scmp.ne.s32.totalorder %s52, %s53
      %p64 = scmp.eq.s32.totalorder %s26, 0
      %p65 = por %p63, %p64
      %p66 = scmp.ne.s32.totalorder %s52, %s53
      %p67 = scmp.eq.s32.totalorder %s27, 1
      %p68 = por %p66, %p67
      %p70 = scmp.ne.s32.totalorder %s53, %s69
      %p71 = scmp.eq.s32.totalorder %s27, 0
      %p72 = por %p70, %p71
      %p73 = scmp.lt.s32.totalorder %s29, 0
      %s74 = scalar_select %p73, %s29, 0
      %p75 = scmp.lt.s32.totalorder %s36, 0
      %s76 = scalar_select %p75, %s36, 0
      %s77 = ssub.s32 %s28, %s40
      %s78 = ssub.s32 %s74, %s76
      %s79 = sor.u32 %s77, %s78
      %p80 = scmp.eq.s32.totalorder %s79, 0
      %s82 = sadd.s32 %s81, 1
      %s83 = scalar_select %p80, %s81, %s82
      %p86 = pneg %p80
      %p87 = scmp.eq.s32.totalorder %s21, 1
      %p88 = por %p86, %p87
      %p89 = scmp.ne.s32.totalorder %s81, %s84
      %p90 = scmp.eq.s32.totalorder %s21, 0
      %p91 = por %p89, %p90
      %p92 = scmp.ne.s32.totalorder %s81, %s84
      %p93 = scmp.eq.s32.totalorder %s26, 1
      %p94 = por %p92, %p93
      %p95 = scmp.ne.s32.totalorder %s84, %s85
      %p96 = scmp.eq.s32.totalorder %s26, 0
      %p97 = por %p95, %p96
      %p98 = scmp.ne.s32.totalorder %s84, %s85
      %p99 = scmp.eq.s32.totalorder %s27, 1
      %p100 = por %p98, %p99
      %p102 = scmp.ne.s32.totalorder %s85, %s101
      %p103 = scmp.eq.s32.totalorder %s27, 0
      %p104 = por %p102, %p103
      %s106 = sadd.s32 %s105, 1
      %p109 = scmp.eq.s32.totalorder %s21, 1
      %p110 = scmp.ne.s32.totalorder %s105, %s107
      %p111 = scmp.eq.s32.totalorder %s21, 0
      %p112 = por %p110, %p111
      %p113 = scmp.ne.s32.totalorder %s105, %s107
      %p114 = scmp.eq.s32.totalorder %s26, 1
      %p115 = por %p113, %p114
      %p116 = scmp.ne.s32.totalorder %s107, %s108
      %p117 = scmp.eq.s32.totalorder %s26, 0
      %p118 = por %p116, %p117
      %p119 = scmp.ne.s32.totalorder %s107, %s108
      %p120 = scmp.eq.s32.totalorder %s27, 1
      %p121 = por %p119, %p120
      %p123 = scmp.ne.s32.totalorder %s108, %s122
      %p124 = scmp.eq.s32.totalorder %s27, 0
      %p125 = por %p123, %p124
      %s127 = sadd.s32 %s126, 1
      %p130 = scmp.eq.s32.totalorder %s21, 1
      %p131 = scmp.ne.s32.totalorder %s126, %s128
      %p132 = scmp.eq.s32.totalorder %s21, 0
      %p133 = por %p131, %p132
      %p134 = scmp.ne.s32.totalorder %s126, %s128
      %p135 = scmp.eq.s32.totalorder %s26, 1
      %p136 = por %p134, %p135
      %p137 = scmp.ne.s32.totalorder %s128, %s129
      %p138 = scmp.eq.s32.totalorder %s26, 0
      %p139 = por %p137, %p138
      %p140 = scmp.ne.s32.totalorder %s128, %s129
      %p141 = scmp.eq.s32.totalorder %s27, 1
      %p142 = por %p140, %p141
      %p144 = scmp.ne.s32.totalorder %s129, %s143
      %p145 = scmp.eq.s32.totalorder %s27, 0
      %p146 = por %p144, %p145
      %s147 = ssub.s32 %s29, %s36
      %p148 = scmp.eq.s32.totalorder %s147, 0
      %s150 = sadd.s32 %s149, 1
      %s151 = scalar_select %p148, %s149, %s150
      %p154 = pneg %p148
      %p155 = scmp.eq.s32.totalorder %s21, 1
      %p156 = por %p154, %p155
      %p157 = scmp.ne.s32.totalorder %s149, %s152
      %p158 = scmp.eq.s32.totalorder %s21, 0
      %p159 = por %p157, %p158
      %p160 = scmp.ne.s32.totalorder %s149, %s152
      %p161 = scmp.eq.s32.totalorder %s26, 1
      %p162 = por %p160, %p161
      %p163 = scmp.ne.s32.totalorder %s152, %s153
      %p164 = scmp.eq.s32.totalorder %s26, 0
      %p165 = por %p163, %p164
      %p166 = scmp.ne.s32.totalorder %s152, %s153
      %p167 = scmp.eq.s32.totalorder %s27, 1
      %p168 = por %p166, %p167
      %p170 = scmp.ne.s32.totalorder %s153, %s169
      %p171 = scmp.eq.s32.totalorder %s27, 0
      %p172 = por %p170, %p171
      %s173 = ssub.s32 %s28, %s40
      %s174 = ssub.s32 %s29, %s36
      %s175 = sor.u32 %s173, %s174
      %p176 = scmp.eq.s32.totalorder %s175, 0
      %s178 = sadd.s32 %s177, 1
      %s179 = scalar_select %p176, %s177, %s178
      %p182 = pneg %p176
      %p183 = scmp.eq.s32.totalorder %s21, 1
      %p184 = por %p182, %p183
      %p185 = scmp.ne.s32.totalorder %s177, %s180
      %p186 = scmp.eq.s32.totalorder %s21, 0
      %p187 = por %p185, %p186
      %p188 = scmp.ne.s32.totalorder %s177, %s180
      %p189 = scmp.eq.s32.totalorder %s26, 1
      %p190 = por %p188, %p189
      %p191 = scmp.ne.s32.totalorder %s180, %s181
      %p192 = scmp.eq.s32.totalorder %s26, 0
      %p193 = por %p191, %p192
      %p194 = scmp.ne.s32.totalorder %s180, %s181
      %p195 = scmp.eq.s32.totalorder %s27, 1
      %p196 = por %p194, %p195
      %p198 = scmp.ne.s32.totalorder %s181, %s197
      %p199 = scmp.eq.s32.totalorder %s27, 0
      %p200 = por %p198, %p199
      %p201 = scmp.le.s32.totalorder 1, %s21
      %p202 = scmp.lt.s32.totalorder %s21, 3
      %p203 = pnand %p201, %p202
      %p204 = pneg %p203
      // Predicated region
      $region9: #{tpu_custom_call.1} parent=5 // pred_check
        _
      $region10: #{tpu_custom_call.1} parent=5 // pred_check_branch
        %206 = sbr.rel (%p203) target = $region12
      $region11: #{tpu_custom_call.1} parent=5 // pred_region
        %s207 = ssub.s32 %s21, 1
        // Predicated region
        $region13: #{tpu_custom_call.1} parent=11 // pred_check
          %p208 = pneg %p118
        $region14: #{tpu_custom_call.1} parent=11 // pred_check_branch
          %210 = sbr.rel (%p208) target = $region16
        $region15: #{tpu_custom_call.1} parent=11 // pred_region
          %212 = vsyncadd [#allocation7], 0
          %s213 = sshll.u32 %s2, 4
          %s214 = int_to_ptr.hbm [resolvable:$true] %s213
          %s215 = sshll.u32 [#allocation8], 4
          %s216 = int_to_ptr.vmem [resolvable:$true] %s215
          %221 = dma.hbm_to_vmem [thread:$0]  %s214, 640, %s216, [#allocation7], 128, 128, 8
        $region16: #{tpu_custom_call.1} parent=11 // pred_fallthru
          _
        // Predicated region
        $region17: #{tpu_custom_call.1} parent=11 // pred_check
          %p222 = pneg %p139
        $region18: #{tpu_custom_call.1} parent=11 // pred_check_branch
          %224 = sbr.rel (%p222) target = $region20
        $region19: #{tpu_custom_call.1} parent=11 // pred_region
          %226 = vsyncadd [#allocation10], 0
          %s227 = sshll.u32 %s3, 4
          %s228 = int_to_ptr.hbm [resolvable:$true] %s227
          %s229 = sshll.u32 [#allocation9], 4
          %s230 = int_to_ptr.vmem [resolvable:$true] %s229
          %235 = dma.hbm_to_vmem [thread:$0]  %s228, 640, %s230, [#allocation10], 128, 128, 8
        $region20: #{tpu_custom_call.1} parent=11 // pred_fallthru
          _
        // Predicated region
        $region21: #{tpu_custom_call.1} parent=11 // pred_check
          %p236 = pneg %p165
        $region22: #{tpu_custom_call.1} parent=11 // pred_check_branch
          %238 = sbr.rel (%p236) target = $region24
        $region23: #{tpu_custom_call.1} parent=11 // pred_region
          %s239 = smul.u32 2, %s31
          %241 = vsyncadd [#allocation10], 0
          %s242 = smul.addr %s239, 8
          %s243 = scalar_lea.hbm %s4, %s242
          %s244 = sshll.u32 %s243, 4
          %s245 = int_to_ptr.hbm [resolvable:$true] %s244
          %s246 = sshll.u32 [#allocation11], 4
          %s247 = int_to_ptr.vmem [resolvable:$true] %s246
          %252 = dma.hbm_to_vmem [thread:$0]  %s245, 256, %s247, [#allocation10], 128, 128, 8
        $region24: #{tpu_custom_call.1} parent=11 // pred_fallthru
          _
      $region12: #{tpu_custom_call.1} parent=5 // pred_fallthru
        _
      %p253 = scmp.lt.s32.totalorder %s21, 2
      // Predicated region
      $region25: #{tpu_custom_call.1} parent=5 // pred_check
        %p254 = pneg %p253
      $region26: #{tpu_custom_call.1} parent=5 // pred_check_branch
        %256 = sbr.rel (%p254) target = $region28
      $region27: #{tpu_custom_call.1} parent=5 // pred_region
        // Predicated region
        $region29: #{tpu_custom_call.1} parent=27 // pred_check
          %p257 = pneg %p59
        $region30: #{tpu_custom_call.1} parent=27 // pred_check_branch
          %259 = sbr.rel (%p257) target = $region32
        $region31: #{tpu_custom_call.1} parent=27 // pred_region
          %s260 = sand.u32 %s49, 1
          %s261 = scalar_lea.sflag [#allocation4], %s260
          %s262 = sand.u32 %s49, 1
          %s263 = smul.addr %s262, 16
          %s264 = scalar_lea.vmem [#allocation3], %s263
          %p265 = scmp.lt.s32.totalorder %s29, 0
          %s266 = scalar_select %p265, %s29, 0
          %s267 = smul.u32 2, %s266
          %269 = vsyncadd %s261, 0
          %s270 = smul.addr %s28, 2
          %s271 = sadd.s32 %s267, %s270
          %s272 = smul.addr %s271, 8
          %s273 = scalar_lea.hbm %s0, %s272
          %s274 = sshll.u32 %s273, 4
          %s275 = int_to_ptr.hbm [resolvable:$true] %s274
          %s276 = sshll.u32 %s264, 4
          %s277 = int_to_ptr.vmem [resolvable:$true] %s276
          %282 = dma.hbm_to_vmem [thread:$0]  %s275, 256, %s277, %s261, 128, 128, 8
        $region32: #{tpu_custom_call.1} parent=27 // pred_fallthru
          _
        // Predicated region
        $region33: #{tpu_custom_call.1} parent=27 // pred_check
          %p283 = pneg %p91
        $region34: #{tpu_custom_call.1} parent=27 // pred_check_branch
          %285 = sbr.rel (%p283) target = $region36
        $region35: #{tpu_custom_call.1} parent=27 // pred_region
          %s286 = sand.u32 %s21, 1
          %s287 = scalar_lea.sflag [#allocation7], %s286
          %s288 = sand.u32 %s81, 1
          %s289 = smul.addr %s288, 16
          %s290 = scalar_lea.vmem [#allocation6], %s289
          %p291 = scmp.lt.s32.totalorder %s29, 0
          %s292 = scalar_select %p291, %s29, 0
          %s293 = smul.u32 2, %s292
          %295 = vsyncadd %s287, 0
          %s296 = smul.addr %s28, 2
          %s297 = sadd.s32 %s293, %s296
          %s298 = smul.addr %s297, 8
          %s299 = scalar_lea.hbm %s1, %s298
          %s300 = sshll.u32 %s299, 4
          %s301 = int_to_ptr.hbm [resolvable:$true] %s300
          %s302 = sshll.u32 %s290, 4
          %s303 = int_to_ptr.vmem [resolvable:$true] %s302
          %308 = dma.hbm_to_vmem [thread:$0]  %s301, 256, %s303, %s287, 128, 128, 8
        $region36: #{tpu_custom_call.1} parent=27 // pred_fallthru
          _
      $region28: #{tpu_custom_call.1} parent=5 // pred_fallthru
        _
      %p309 = scmp.le.s32.totalorder 1, %s21
      %p310 = scmp.lt.s32.totalorder %s21, 3
      %p311 = pnand %p309, %p310
      %p312 = pneg %p311
      // Predicated region
      $region37: #{tpu_custom_call.1} parent=5 // pred_check
        _
      $region38: #{tpu_custom_call.1} parent=5 // pred_check_branch
        %314 = sbr.rel (%p311) target = $region40
      $region39: #{tpu_custom_call.1} parent=5 // pred_region
        %s315 = ssub.s32 %s21, 1
        %s316 = sand.u32 %s52, 1
        %s317 = scalar_lea.sflag [#allocation4], %s316
        %s318 = sand.u32 %s52, 1
        %s319 = smul.addr %s318, 16
        %s320 = scalar_lea.vmem [#allocation3], %s319
        // Predicated region
        $region41: #{tpu_custom_call.1} parent=39 // pred_check
          %p321 = pneg %p65
        $region42: #{tpu_custom_call.1} parent=39 // pred_check_branch
          %323 = sbr.rel (%p321) target = $region44
        $region43: #{tpu_custom_call.1} parent=39 // pred_region
          %325 = dma.done %s317, 256
        $region44: #{tpu_custom_call.1} parent=39 // pred_fallthru
          _
        %s326 = sand.u32 %s26, 1
        %s327 = scalar_lea.sflag [#allocation7], %s326
        %s328 = sand.u32 %s84, 1
        %s329 = smul.addr %s328, 16
        %s330 = scalar_lea.vmem [#allocation6], %s329
        // Predicated region
        $region45: #{tpu_custom_call.1} parent=39 // pred_check
          %p331 = pneg %p97
        $region46: #{tpu_custom_call.1} parent=39 // pred_check_branch
          %333 = sbr.rel (%p331) target = $region48
        $region47: #{tpu_custom_call.1} parent=39 // pred_region
          %335 = dma.done %s327, 256
        $region48: #{tpu_custom_call.1} parent=39 // pred_fallthru
          _
        // Predicated region
        $region49: #{tpu_custom_call.1} parent=39 // pred_check
          %p336 = pneg %p118
        $region50: #{tpu_custom_call.1} parent=39 // pred_check_branch
          %338 = sbr.rel (%p336) target = $region52
        $region51: #{tpu_custom_call.1} parent=39 // pred_region
          %340 = dma.done [#allocation7], 640
        $region52: #{tpu_custom_call.1} parent=39 // pred_fallthru
          _
        // Predicated region
        $region53: #{tpu_custom_call.1} parent=39 // pred_check
          %p341 = pneg %p139
        $region54: #{tpu_custom_call.1} parent=39 // pred_check_branch
          %343 = sbr.rel (%p341) target = $region56
        $region55: #{tpu_custom_call.1} parent=39 // pred_region
          %345 = dma.done [#allocation10], 640
        $region56: #{tpu_custom_call.1} parent=39 // pred_fallthru
          _
        // Predicated region
        $region57: #{tpu_custom_call.1} parent=39 // pred_check
          %p346 = pneg %p165
        $region58: #{tpu_custom_call.1} parent=39 // pred_check_branch
          %348 = sbr.rel (%p346) target = $region60
        $region59: #{tpu_custom_call.1} parent=39 // pred_region
          %350 = dma.done [#allocation10], 256
        $region60: #{tpu_custom_call.1} parent=39 // pred_fallthru
          _
        %s351 = sand.u32 %s52, 1
        %s352 = scalar_lea.sflag [#allocation4], %s351
        %s353 = sand.u32 %s52, 1
        %s354 = smul.addr %s353, 16
        %s355 = scalar_lea.vmem [#allocation3], %s354
        %p356 = pneg %p65
        %p357 = pneg %p62
        %s358 = sand.u32 %s26, 1
        %s359 = scalar_lea.sflag [#allocation7], %s358
        %s360 = sand.u32 %s84, 1
        %s361 = smul.addr %s360, 16
        %s362 = scalar_lea.vmem [#allocation6], %s361
        %p363 = pneg %p97
        %p364 = pneg %p94
        %p365 = pneg %p118
        %p366 = pneg %p115
        %p367 = pneg %p139
        %p368 = pneg %p136
        %p369 = pneg %p165
        %p370 = pneg %p162
        %p371 = pneg %p193
        %p372 = pneg %p190
        %s373 = sand.u32 %s180, 1
        %s374 = scalar_lea.sflag [#allocation5], %s373
        %s375 = sand.u32 %s180, 1
        %s376 = smul.addr %s375, 16
        %s377 = scalar_lea.vmem [#allocation12], %s376
        %p378 = scmp.lt.s32.totalorder %s31, 0
        %s379 = scalar_select %p378, %s31, 0
        %s380 = smul.u32 2, %s379
        %p381 = scmp.lt.s32.totalorder %s31, 0
        %s382 = scalar_select %p381, %s31, 0
        %s383 = smul.u32 2, %s382
        %s384 = smul.u32 2, %s31
        %s385 = smul.u32 2, %s31
        %v386 = vld [vmem:[%s320] sm:$0xff]
        %v387 = vld [vmem:[%s320 + $0x8] sm:$0xff]
        %v388 = vld [vmem:[%s330] sm:$0xff]
        %v389 = vld [vmem:[%s330 + $0x8] sm:$0xff]
        %s390 = smul.u32 %s31, 16
        %s391 = ssub.s32 8, %s390
        %v392 = vlaneseq
        %v393 = vshrl.u32 %v392, 7
        %v394 = vadd.s32 %v393, 8
        %v395 = vstv %s391
        %vm396 = vcmp.lt.s32.totalorder %v393, %v395
        %vm397 = vcmp.lt.s32.totalorder %v394, %v395
        %v398 = vsel %vm396, %v386, 0.0
        %v399 = vsel %vm397, %v387, 0.0
        %v400 = vsel %vm396, %v388, 0.0
        %v401 = vsel %vm397, %v389, 0.0
        %v402 = vld [vmem:[#allocation8] sm:$0xff]
        %v403 = vld [vmem:[#allocation8 + $0x8] sm:$0xff]
        %v404 = vld [vmem:[#allocation8 + $0x10] sm:$0xff]
        %v405 = vld [vmem:[#allocation8 + $0x18] sm:$0xff]
        %v406 = vld [vmem:[#allocation8 + $0x20] sm:$0x1]
        %v407 = vld [vmem:[#allocation9] sm:$0xff]
        %v408 = vld [vmem:[#allocation9 + $0x8] sm:$0xff]
        %v409 = vld [vmem:[#allocation9 + $0x10] sm:$0xff]
        %v410 = vld [vmem:[#allocation9 + $0x18] sm:$0xff]
        %v411 = vld [vmem:[#allocation9 + $0x20] sm:$0x1]
        %vm412 = vcmask 269312
        %v414 = vsel %vm412, %v400, 0
        %v417 = vsel %vm412, %v401, 0
        %vm419 = vcmask 1040384
        %v421 = vsel %vm419, %v411, 0
        %423 = vmatpush.msra.mxu0 0.0
        %424 = vmatpush.msra.mxu0 0.0
        %425 = vmatpush.msra.mxu0 0.0
        %426 = vmatpush.msra.mxu0 0.0
        %427 = vmatpush.msra.mxu0 0.0
        %428 = vmatpush.msra.mxu0 0.0
        %429 = vmatpush.msra.mxu0 0.0
        %430 = vmatpush.msra.mxu0 0.0
        %431 = vmatpush.msra.mxu0 0.0
        %432 = vmatpush.msra.mxu0 0.0
        %433 = vmatpush.msra.mxu0 0.0
        %434 = vmatpush.msra.mxu0 %v421
        %435 = vmatpush.msra.mxu0 %v410
        %436 = vmatpush.msra.mxu0 %v409
        %437 = vmatpush.msra.mxu0 %v408
        %438 = vmatpush.msra.mxu0 %v407
        %439 = vmatmul.f32.gmra.mxu0 %v414
        %v440 = vpop.f32.mrf.mxu0
        %v441 = vadd.f32 0.0, %v440
        %442 = vmatmul.f32.gmra.mxu0 %v417
        %v443 = vpop.f32.mrf.mxu0
        %v444 = vadd.f32 0.0, %v443
        %445 = vdwg.mxu0
        %v447 = vsel %vm412, %v398, 0
        %v450 = vsel %vm412, %v399, 0
        %v453 = vsel %vm419, %v406, 0
        %455 = vmatpush.msra.mxu0 0.0
        %456 = vmatpush.msra.mxu0 0.0
        %457 = vmatpush.msra.mxu0 0.0
        %458 = vmatpush.msra.mxu0 0.0
        %459 = vmatpush.msra.mxu0 0.0
        %460 = vmatpush.msra.mxu0 0.0
        %461 = vmatpush.msra.mxu0 0.0
        %462 = vmatpush.msra.mxu0 0.0
        %463 = vmatpush.msra.mxu0 0.0
        %464 = vmatpush.msra.mxu0 0.0
        %465 = vmatpush.msra.mxu0 0.0
        %466 = vmatpush.msra.mxu0 %v453
        %467 = vmatpush.msra.mxu0 %v405
        %468 = vmatpush.msra.mxu0 %v404
        %469 = vmatpush.msra.mxu0 %v403
        %470 = vmatpush.msra.mxu0 %v402
        %471 = vmatmul.f32.gmra.mxu0 %v447
        %v472 = vpop.f32.mrf.mxu0
        %v473 = vadd.f32 %v441, %v472
        %474 = vmatmul.f32.gmra.mxu0 %v450
        %v475 = vpop.f32.mrf.mxu0
        %v476 = vadd.f32 %v444, %v475
        %477 = vdwg.mxu0
        %p478 = scmp.eq.s32.totalorder %s31, 0
        // Predicated region
        $region61: #{tpu_custom_call.1} parent=39 // pred_check
          %p479 = pneg %p478
        $region62: #{tpu_custom_call.1} parent=39 // pred_check_branch
          %481 = sbr.rel (%p479) target = $region64
        $region63: #{tpu_custom_call.1} parent=39 // pred_region
          %vm482 = vcmask 124928
          %483 = vst.msk [vmem:[#allocation2] sm:$0x7] %vm482, 0.0
        $region64: #{tpu_custom_call.1} parent=39 // pred_fallthru
          _
        %v484 = vld [vmem:[#allocation2] sm:$0x7]
        %487 = vrot.lane.b32.xlu0 %v473, 112
        %v488 = vpop.permute.xlu0 %487
        %489 = vrot.lane.b32.xlu0 %v476, 112
        %v490 = vpop.permute.xlu0 %489
        %v493 = vrot.slane %v488, 7
        %v494 = vrot.slane %v490, 7
        %vm495 = vcmp.lt.s32.totalorder %v393, 1
        %v496 = vsel %vm495, %v493, %v494
        %v497 = vsel %vm495, %v494, %v493
        %vm498 = vcmp.ge.s32.totalorder %v393, 1
        %vm499 = vcmp.ge.s32.totalorder %v394, 1
        %v500 = vsel %vm498, %v497, 0.0
        %v501 = vsel %vm499, %v496, 0.0
        %v502 = vadd.f32 %v473, %v500
        %v503 = vadd.f32 %v476, %v501
        %v504 = vsel %vm495, %v497, 0.0
        %v505 = vadd.f32 %v504, 0.0
        %506 = vrot.lane.b32.xlu0 %v473, 96
        %v507 = vpop.permute.xlu0 %506
        %508 = vrot.lane.b32.xlu0 %v476, 96
        %v509 = vpop.permute.xlu0 %508
        %v512 = vrot.slane %v507, 6
        %v513 = vrot.slane %v509, 6
        %vm514 = vcmp.lt.s32.totalorder %v393, 2
        %v515 = vsel %vm514, %v512, %v513
        %v516 = vsel %vm514, %v513, %v512
        %vm517 = vcmp.ge.s32.totalorder %v393, 2
        %vm518 = vcmp.ge.s32.totalorder %v394, 2
        %v519 = vsel %vm517, %v516, 0.0
        %v520 = vsel %vm518, %v515, 0.0
        %v521 = vadd.f32 %v502, %v519
        %v522 = vadd.f32 %v503, %v520
        %v523 = vsel %vm514, %v516, 0.0
        %v524 = vadd.f32 %v505, %v523
        %525 = vrot.lane.b32.xlu0 %v473, 80
        %v526 = vpop.permute.xlu0 %525
        %527 = vrot.lane.b32.xlu0 %v476, 80
        %v528 = vpop.permute.xlu0 %527
        %v531 = vrot.slane %v526, 5
        %v532 = vrot.slane %v528, 5
        %vm533 = vcmp.lt.s32.totalorder %v393, 3
        %v534 = vsel %vm533, %v531, %v532
        %v535 = vsel %vm533, %v532, %v531
        %vm536 = vcmp.ge.s32.totalorder %v393, 3
        %vm537 = vcmp.ge.s32.totalorder %v394, 3
        %v538 = vsel %vm536, %v535, 0.0
        %v539 = vsel %vm537, %v534, 0.0
        %v540 = vadd.f32 %v521, %v538
        %v541 = vadd.f32 %v522, %v539
        %v542 = vsel %vm533, %v535, 0.0
        %v543 = vadd.f32 %v524, %v542
        %vm544 = vcmask 124928
        %545 = vst.msk [vmem:[#allocation2] sm:$0x7] %vm544, %v543
        %v546 = vld [vmem:[#allocation11] sm:$0xff]
        %v547 = vld [vmem:[#allocation11 + $0x8] sm:$0xff]
        %v548 = vmul.f32 %v540, %v546
        %v549 = vmul.f32 %v541, %v547
        %vm550 = vcmask 130048
        %551 = vst.msk [vmem:[%s377] sm:$0xff] %vm550, %v548
        %552 = vst.msk [vmem:[%s377 + $0x8] sm:$0xff] %vm550, %v549
        %v553 = vld [vmem:[%s377] sm:$0x7]
        %v554 = vld [vmem:[#allocation11] sm:$0x7]
        %v555 = vmul.f32 %v484, %v554
        %v556 = vadd.f32 %v553, %v555
        %557 = vst.msk [vmem:[%s377] sm:$0x7] %vm544, %v556
        %s558 = sand.u32 %s180, 1
        %s559 = scalar_lea.sflag [#allocation5], %s558
        %s560 = sand.u32 %s180, 1
        %s561 = smul.addr %s560, 16
        %s562 = scalar_lea.vmem [#allocation12], %s561
        // Predicated region
        $region65: #{tpu_custom_call.1} parent=39 // pred_check
          %p563 = pneg %p190
        $region66: #{tpu_custom_call.1} parent=39 // pred_check_branch
          %565 = sbr.rel (%p563) target = $region68
        $region67: #{tpu_custom_call.1} parent=39 // pred_region
          %s566 = smul.u32 2, %s31
          %568 = vsyncadd %s559, 0
          %s569 = smul.addr %s30, 2
          %s570 = sadd.s32 %s566, %s569
          %s571 = smul.addr %s570, 8
          %s572 = scalar_lea.hbm %s5, %s571
          %s573 = sshll.u32 %s562, 4
          %s574 = int_to_ptr.vmem [resolvable:$true] %s573
          %s575 = sshll.u32 %s572, 4
          %s576 = int_to_ptr.hbm [resolvable:$true] %s575
          %581 = dma.vmem_to_hbm [thread:$0]  %s574, 256, %s576, %s559, 128, 128, 8
        $region68: #{tpu_custom_call.1} parent=39 // pred_fallthru
          _
      $region40: #{tpu_custom_call.1} parent=5 // pred_fallthru
        _
      %p582 = scmp.le.s32.totalorder 2, %s21
      // Predicated region
      $region69: #{tpu_custom_call.1} parent=5 // pred_check
        %p583 = pneg %p582
      $region70: #{tpu_custom_call.1} parent=5 // pred_check_branch
        %585 = sbr.rel (%p583) target = $region72
      $region71: #{tpu_custom_call.1} parent=5 // pred_region
        %s586 = ssub.s32 %s21, 2
        // Predicated region
        $region73: #{tpu_custom_call.1} parent=71 // pred_check
          %p587 = pneg %p196
        $region74: #{tpu_custom_call.1} parent=71 // pred_check_branch
          %589 = sbr.rel (%p587) target = $region76
        $region75: #{tpu_custom_call.1} parent=71 // pred_region
          %s590 = sand.u32 %s181, 1
          %s591 = scalar_lea.sflag [#allocation5], %s590
          %s592 = sand.u32 %s181, 1
          %s593 = smul.addr %s592, 16
          %s594 = scalar_lea.vmem [#allocation12], %s593
          %596 = dma.done %s591, 256
        $region76: #{tpu_custom_call.1} parent=71 // pred_fallthru
          _
      $region72: #{tpu_custom_call.1} parent=5 // pred_fallthru
        _
    $region6: #{tpu_custom_call.1} parent=1 // loop_footer
      %s25 = sadd.s32 1, %s21
    $region7: #{tpu_custom_call.1} parent=1 // loop_footer_branch
      %20 = sbr.rel target = $region3
    $region8: #{tpu_custom_call.1} parent=1 // loop_exit
      _
    %597 = vsyncpa [#allocation4], 1
    %s598 = scalar_lea.sflag [#allocation4], 1
    %599 = vsyncpa %s598, 1
    %600 = vsyncpa [#allocation7], 1
    %s601 = scalar_lea.sflag [#allocation7], 1
    %602 = vsyncpa %s601, 1
    %603 = vsyncpa [#allocation10], 1
    %604 = vsyncpa [#allocation5], 1
    %s605 = scalar_lea.sflag [#allocation5], 1
    %606 = vsyncpa %s605, 1

// kernel: tpu_custom_call.1
$region0: #{tpu_custom_call.1}
  #allocation0 [shape = 'u32[]', space=smem, size = 0x4, offset = 0x4, fixed_abs, tag = 'smem constant byte address 0x4 - core index']
  #allocation1 [shape = 'u32[72,128]{1,0:T(1,128)}', space=vmem, size = 0x9000, scoped, tag = 'internal scratch']
  #allocation2 [shape = 'f32[3,16]{1,0:T(4,128)}', space=vmem, size = 0x800, scoped, tag = 'scratch operand']
  %s0 = inlined_call_operand.hbm [shape: f32[2,1,16,33], index: 0, kind: input, shape index: {}]
  %s1 = inlined_call_operand.hbm [shape: f32[2,1,16,33], index: 1, kind: input, shape index: {}]
  %s2 = inlined_call_operand.hbm [shape: f32[33,64], index: 2, kind: input, shape index: {}]
  %s3 = inlined_call_operand.hbm [shape: f32[33,64], index: 3, kind: input, shape index: {}]
  %s4 = inlined_call_operand.hbm [shape: f32[16,16], index: 4, kind: input, shape index: {}]
  %s5 = inlined_call_operand.hbm [shape: f32[2,16,16], index: 5, kind: output, shape index: {}]
  %s6 = sld [smem:[#allocation0]]
  $region77: #{tpu_custom_call.1} parent=0
    _
  %s8 = ssub.s32 1, %s6
  %s9 = scalar_select 0, %s8, %s6
  $region1: #{tpu_custom_call.1} parent=0
    #allocation3 [shape = 'u8[16384]{0}', space=vmem, size = 0x4000, scoped, tag = 'input window, operand 0']
    #allocation4 [shape = 's32[2]{0}', space=sflag, size = 0x8, scoped, tag = 'scoped memory for tpu_custom_call.1']
    #allocation5 [shape = 's32[2]{0}', space=sflag, size = 0x8, scoped, tag = 'scoped memory for tpu_custom_call.1']
    #allocation6 [shape = 'u8[16384]{0}', space=vmem, size = 0x4000, scoped, tag = 'input window, operand 1']
    #allocation7 [shape = 's32[2]{0}', space=sflag, size = 0x8, scoped, tag = 'scoped memory for tpu_custom_call.1']
    #allocation8 [shape = 'u8[20480]{0}', space=vmem, size = 0x5000, scoped, tag = 'input window, operand 2, single buffered']
    #allocation9 [shape = 'u8[20480]{0}', space=vmem, size = 0x5000, scoped, tag = 'input window, operand 3, single buffered']
    #allocation10 [shape = 's32[1]{0}', space=sflag, size = 0x4, scoped, tag = 'scoped memory for tpu_custom_call.1']
    #allocation11 [shape = 'u8[8192]{0}', space=vmem, size = 0x2000, scoped, tag = 'input window, operand 4, single buffered']
    #allocation12 [shape = 'u8[16384]{0}', space=vmem, size = 0x4000, scoped, tag = 'output window, operand 0']
    %10 = vsyncpa [#allocation4], 0
    %s11 = scalar_lea.sflag [#allocation4], 1
    %12 = vsyncpa %s11, 0
    %13 = vsyncpa [#allocation7], 0
    %s14 = scalar_lea.sflag [#allocation7], 1
    %15 = vsyncpa %s14, 0
    %16 = vsyncpa [#allocation10], 0
    %17 = vsyncpa [#allocation5], 0
    %s18 = scalar_lea.sflag [#allocation5], 1
    %19 = vsyncpa %s18, 0
    loop: start=0, step=1, limit=4
    $region2: #{tpu_custom_call.1} parent=1 // loop_pre_header
      _
    $region3: #{tpu_custom_call.1} parent=1 // loop_header
      %s21 = sphi 0, %s25
      %p22 = scmp.ge.s32.totalorder %s21, 4
      %s28 = sphi 0, %s40
      %s29 = sphi 0, %s36
      %s30 = sphi 0, %s28
      %s31 = sphi 0, %s29
      %s32 = sphi 0, %s30
      %s33 = sphi 0, %s31
      %s49 = sphi 0, %s51
      %s52 = sphi 0, %s49
      %s53 = sphi 0, %s52
      %s69 = sphi 0, %s53
      %s81 = sphi 0, %s83
      %s84 = sphi 0, %s81
      %s85 = sphi 0, %s84
      %s101 = sphi 0, %s85
      %s105 = sphi 0, %s105
      %s107 = sphi 0, %s105
      %s108 = sphi 0, %s107
      %s122 = sphi 0, %s108
      %s126 = sphi 0, %s126
      %s128 = sphi 0, %s126
      %s129 = sphi 0, %s128
      %s143 = sphi 0, %s129
      %s149 = sphi 0, %s151
      %s152 = sphi 0, %s149
      %s153 = sphi 0, %s152
      %s169 = sphi 0, %s153
      %s177 = sphi 0, %s179
      %s180 = sphi 0, %s177
      %s181 = sphi 0, %s180
      %s197 = sphi 0, %s181
    $region4: #{tpu_custom_call.1} parent=1 // loop_header_branch
      %24 = sbr.rel (%p22) target = $region8
    $region5: #{tpu_custom_call.1} parent=1 // loop_body
      %s26 = ssub.s32 %s21, 1
      %s27 = ssub.s32 %s21, 2
      %s34 = sadd.s32 1, %s29
      %p35 = scmp.ge.s32.totalorder %s34, 1
      %s36 = scalar_select %p35, 0, %s34
      %s37 = sadd.s32 1, %s28
      %s38 = scalar_select %p35, %s37, %s28
      %p39 = scmp.ge.s32.totalorder %s38, 2
      %s40 = scalar_select %p39, 0, %s38
      %p41 = scmp.lt.s32.totalorder %s29, 0
      %s42 = scalar_select %p41, %s29, 0
      %p43 = scmp.lt.s32.totalorder %s36, 0
      %s44 = scalar_select %p43, %s36, 0
      %s45 = ssub.s32 %s28, %s40
      %s46 = ssub.s32 %s42, %s44
      %s47 = sor.u32 %s45, %s46
      %p48 = scmp.eq.s32.totalorder %s47, 0
      %s50 = sadd.s32 %s49, 1
      %s51 = scalar_select %p48, %s49, %s50
      %p54 = pneg %p48
      %p55 = scmp.eq.s32.totalorder %s21, 1
      %p56 = por %p54, %p55
      %p57 = scmp.ne.s32.totalorder %s49, %s52
      %p58 = scmp.eq.s32.totalorder %s21, 0
      %p59 = por %p57, %p58
      %p60 = scmp.ne.s32.totalorder %s49, %s52
      %p61 = scmp.eq.s32.totalorder %s26, 1
      %p62 = por %p60, %p61
      %p63 = scmp.ne.s32.totalorder %s52, %s53
      %p64 = scmp.eq.s32.totalorder %s26, 0
      %p65 = por %p63, %p64
      %p66 = scmp.ne.s32.totalorder %s52, %s53
      %p67 = scmp.eq.s32.totalorder %s27, 1
      %p68 = por %p66, %p67
      %p70 = scmp.ne.s32.totalorder %s53, %s69
      %p71 = scmp.eq.s32.totalorder %s27, 0
      %p72 = por %p70, %p71
      %p73 = scmp.lt.s32.totalorder %s29, 0
      %s74 = scalar_select %p73, %s29, 0
      %p75 = scmp.lt.s32.totalorder %s36, 0
      %s76 = scalar_select %p75, %s36, 0
      %s77 = ssub.s32 %s28, %s40
      %s78 = ssub.s32 %s74, %s76
      %s79 = sor.u32 %s77, %s78
      %p80 = scmp.eq.s32.totalorder %s79, 0
      %s82 = sadd.s32 %s81, 1
      %s83 = scalar_select %p80, %s81, %s82
      %p86 = pneg %p80
      %p87 = scmp.eq.s32.totalorder %s21, 1
      %p88 = por %p86, %p87
      %p89 = scmp.ne.s32.totalorder %s81, %s84
      %p90 = scmp.eq.s32.totalorder %s21, 0
      %p91 = por %p89, %p90
      %p92 = scmp.ne.s32.totalorder %s81, %s84
      %p93 = scmp.eq.s32.totalorder %s26, 1
      %p94 = por %p92, %p93
      %p95 = scmp.ne.s32.totalorder %s84, %s85
      %p96 = scmp.eq.s32.totalorder %s26, 0
      %p97 = por %p95, %p96
      %p98 = scmp.ne.s32.totalorder %s84, %s85
      %p99 = scmp.eq.s32.totalorder %s27, 1
      %p100 = por %p98, %p99
      %p102 = scmp.ne.s32.totalorder %s85, %s101
      %p103 = scmp.eq.s32.totalorder %s27, 0
      %p104 = por %p102, %p103
      %s106 = sadd.s32 %s105, 1
      %p109 = scmp.eq.s32.totalorder %s21, 1
      %p110 = scmp.ne.s32.totalorder %s105, %s107
      %p111 = scmp.eq.s32.totalorder %s21, 0
      %p112 = por %p110, %p111
      %p113 = scmp.ne.s32.totalorder %s105, %s107
      %p114 = scmp.eq.s32.totalorder %s26, 1
      %p115 = por %p113, %p114
      %p116 = scmp.ne.s32.totalorder %s107, %s108
      %p117 = scmp.eq.s32.totalorder %s26, 0
      %p118 = por %p116, %p117
      %p119 = scmp.ne.s32.totalorder %s107, %s108
      %p120 = scmp.eq.s32.totalorder %s27, 1
      %p121 = por %p119, %p120
      %p123 = scmp.ne.s32.totalorder %s108, %s122
      %p124 = scmp.eq.s32.totalorder %s27, 0
      %p125 = por %p123, %p124
      %s127 = sadd.s32 %s126, 1
      %p130 = scmp.eq.s32.totalorder %s21, 1
      %p131 = scmp.ne.s32.totalorder %s126, %s128
      %p132 = scmp.eq.s32.totalorder %s21, 0
      %p133 = por %p131, %p132
      %p134 = scmp.ne.s32.totalorder %s126, %s128
      %p135 = scmp.eq.s32.totalorder %s26, 1
      %p136 = por %p134, %p135
      %p137 = scmp.ne.s32.totalorder %s128, %s129
      %p138 = scmp.eq.s32.totalorder %s26, 0
      %p139 = por %p137, %p138
      %p140 = scmp.ne.s32.totalorder %s128, %s129
      %p141 = scmp.eq.s32.totalorder %s27, 1
      %p142 = por %p140, %p141
      %p144 = scmp.ne.s32.totalorder %s129, %s143
      %p145 = scmp.eq.s32.totalorder %s27, 0
      %p146 = por %p144, %p145
      %s147 = ssub.s32 %s29, %s36
      %p148 = scmp.eq.s32.totalorder %s147, 0
      %s150 = sadd.s32 %s149, 1
      %s151 = scalar_select %p148, %s149, %s150
      %p154 = pneg %p148
      %p155 = scmp.eq.s32.totalorder %s21, 1
      %p156 = por %p154, %p155
      %p157 = scmp.ne.s32.totalorder %s149, %s152
      %p158 = scmp.eq.s32.totalorder %s21, 0
      %p159 = por %p157, %p158
      %p160 = scmp.ne.s32.totalorder %s149, %s152
      %p161 = scmp.eq.s32.totalorder %s26, 1
      %p162 = por %p160, %p161
      %p163 = scmp.ne.s32.totalorder %s152, %s153
      %p164 = scmp.eq.s32.totalorder %s26, 0
      %p165 = por %p163, %p164
      %p166 = scmp.ne.s32.totalorder %s152, %s153
      %p167 = scmp.eq.s32.totalorder %s27, 1
      %p168 = por %p166, %p167
      %p170 = scmp.ne.s32.totalorder %s153, %s169
      %p171 = scmp.eq.s32.totalorder %s27, 0
      %p172 = por %p170, %p171
      %s173 = ssub.s32 %s28, %s40
      %s174 = ssub.s32 %s29, %s36
      %s175 = sor.u32 %s173, %s174
      %p176 = scmp.eq.s32.totalorder %s175, 0
      %s178 = sadd.s32 %s177, 1
      %s179 = scalar_select %p176, %s177, %s178
      %p182 = pneg %p176
      %p183 = scmp.eq.s32.totalorder %s21, 1
      %p184 = por %p182, %p183
      %p185 = scmp.ne.s32.totalorder %s177, %s180
      %p186 = scmp.eq.s32.totalorder %s21, 0
      %p187 = por %p185, %p186
      %p188 = scmp.ne.s32.totalorder %s177, %s180
      %p189 = scmp.eq.s32.totalorder %s26, 1
      %p190 = por %p188, %p189
      %p191 = scmp.ne.s32.totalorder %s180, %s181
      %p192 = scmp.eq.s32.totalorder %s26, 0
      %p193 = por %p191, %p192
      %p194 = scmp.ne.s32.totalorder %s180, %s181
      %p195 = scmp.eq.s32.totalorder %s27, 1
      %p196 = por %p194, %p195
      %p198 = scmp.ne.s32.totalorder %s181, %s197
      %p199 = scmp.eq.s32.totalorder %s27, 0
      %p200 = por %p198, %p199
      %p201 = scmp.le.s32.totalorder 1, %s21
      %p202 = scmp.lt.s32.totalorder %s21, 3
      %p203 = pnand %p201, %p202
      %p204 = pneg %p203
      // Predicated region
      $region9: #{tpu_custom_call.1} parent=5 // pred_check
        _
      $region10: #{tpu_custom_call.1} parent=5 // pred_check_branch
        %206 = sbr.rel (%p203) target = $region12
      $region11: #{tpu_custom_call.1} parent=5 // pred_region
        %s207 = ssub.s32 %s21, 1
        // Predicated region
        $region13: #{tpu_custom_call.1} parent=11 // pred_check
          %p208 = pneg %p118
        $region14: #{tpu_custom_call.1} parent=11 // pred_check_branch
          %210 = sbr.rel (%p208) target = $region16
        $region15: #{tpu_custom_call.1} parent=11 // pred_region
          %212 = vsyncadd [#allocation7], 0
          %s213 = sshll.u32 %s2, 4
          %s214 = int_to_ptr.hbm [resolvable:$true] %s213
          %s215 = sshll.u32 [#allocation8], 4
          %s216 = int_to_ptr.vmem [resolvable:$true] %s215
          %221 = dma.hbm_to_vmem [thread:$0]  %s214, 640, %s216, [#allocation7], 128, 128, 8
        $region16: #{tpu_custom_call.1} parent=11 // pred_fallthru
          _
        // Predicated region
        $region17: #{tpu_custom_call.1} parent=11 // pred_check
          %p222 = pneg %p139
        $region18: #{tpu_custom_call.1} parent=11 // pred_check_branch
          %224 = sbr.rel (%p222) target = $region20
        $region19: #{tpu_custom_call.1} parent=11 // pred_region
          %226 = vsyncadd [#allocation10], 0
          %s227 = sshll.u32 %s3, 4
          %s228 = int_to_ptr.hbm [resolvable:$true] %s227
          %s229 = sshll.u32 [#allocation9], 4
          %s230 = int_to_ptr.vmem [resolvable:$true] %s229
          %235 = dma.hbm_to_vmem [thread:$0]  %s228, 640, %s230, [#allocation10], 128, 128, 8
        $region20: #{tpu_custom_call.1} parent=11 // pred_fallthru
          _
        // Predicated region
        $region21: #{tpu_custom_call.1} parent=11 // pred_check
          %p236 = pneg %p165
        $region22: #{tpu_custom_call.1} parent=11 // pred_check_branch
          %238 = sbr.rel (%p236) target = $region24
        $region23: #{tpu_custom_call.1} parent=11 // pred_region
          %s239 = smul.u32 2, %s31
          %241 = vsyncadd [#allocation10], 0
          %s242 = smul.addr %s239, 8
          %s243 = scalar_lea.hbm %s4, %s242
          %s244 = sshll.u32 %s243, 4
          %s245 = int_to_ptr.hbm [resolvable:$true] %s244
          %s246 = sshll.u32 [#allocation11], 4
          %s247 = int_to_ptr.vmem [resolvable:$true] %s246
          %252 = dma.hbm_to_vmem [thread:$0]  %s245, 256, %s247, [#allocation10], 128, 128, 8
        $region24: #{tpu_custom_call.1} parent=11 // pred_fallthru
          _
      $region12: #{tpu_custom_call.1} parent=5 // pred_fallthru
        _
      %p253 = scmp.lt.s32.totalorder %s21, 2
      // Predicated region
      $region25: #{tpu_custom_call.1} parent=5 // pred_check
        %p254 = pneg %p253
      $region26: #{tpu_custom_call.1} parent=5 // pred_check_branch
        %256 = sbr.rel (%p254) target = $region28
      $region27: #{tpu_custom_call.1} parent=5 // pred_region
        // Predicated region
        $region29: #{tpu_custom_call.1} parent=27 // pred_check
          %p257 = pneg %p59
        $region30: #{tpu_custom_call.1} parent=27 // pred_check_branch
          %259 = sbr.rel (%p257) target = $region32
        $region31: #{tpu_custom_call.1} parent=27 // pred_region
          %s260 = sand.u32 %s49, 1
          %s261 = scalar_lea.sflag [#allocation4], %s260
          %s262 = sand.u32 %s49, 1
          %s263 = smul.addr %s262, 16
          %s264 = scalar_lea.vmem [#allocation3], %s263
          %p265 = scmp.lt.s32.totalorder %s29, 0
          %s266 = scalar_select %p265, %s29, 0
          %s267 = smul.u32 2, %s266
          %269 = vsyncadd %s261, 0
          %s270 = smul.addr %s28, 2
          %s271 = sadd.s32 %s267, %s270
          %s272 = smul.addr %s271, 8
          %s273 = scalar_lea.hbm %s0, %s272
          %s274 = sshll.u32 %s273, 4
          %s275 = int_to_ptr.hbm [resolvable:$true] %s274
          %s276 = sshll.u32 %s264, 4
          %s277 = int_to_ptr.vmem [resolvable:$true] %s276
          %282 = dma.hbm_to_vmem [thread:$0]  %s275, 256, %s277, %s261, 128, 128, 8
        $region32: #{tpu_custom_call.1} parent=27 // pred_fallthru
          _
        // Predicated region
        $region33: #{tpu_custom_call.1} parent=27 // pred_check
          %p283 = pneg %p91
        $region34: #{tpu_custom_call.1} parent=27 // pred_check_branch
          %285 = sbr.rel (%p283) target = $region36
        $region35: #{tpu_custom_call.1} parent=27 // pred_region
          %s286 = sand.u32 %s21, 1
          %s287 = scalar_lea.sflag [#allocation7], %s286
          %s288 = sand.u32 %s81, 1
          %s289 = smul.addr %s288, 16
          %s290 = scalar_lea.vmem [#allocation6], %s289
          %p291 = scmp.lt.s32.totalorder %s29, 0
          %s292 = scalar_select %p291, %s29, 0
          %s293 = smul.u32 2, %s292
          %295 = vsyncadd %s287, 0
          %s296 = smul.addr %s28, 2
          %s297 = sadd.s32 %s293, %s296
          %s298 = smul.addr %s297, 8
          %s299 = scalar_lea.hbm %s1, %s298
          %s300 = sshll.u32 %s299, 4
          %s301 = int_to_ptr.hbm [resolvable:$true] %s300
          %s302 = sshll.u32 %s290, 4
          %s303 = int_to_ptr.vmem [resolvable:$true] %s302
          %308 = dma.hbm_to_vmem [thread:$0]  %s301, 256, %s303, %s287, 128, 128, 8
        $region36: #{tpu_custom_call.1} parent=27 // pred_fallthru
          _
      $region28: #{tpu_custom_call.1} parent=5 // pred_fallthru
        _
      %p309 = scmp.le.s32.totalorder 1, %s21
      %p310 = scmp.lt.s32.totalorder %s21, 3
      %p311 = pnand %p309, %p310
      %p312 = pneg %p311
      // Predicated region
      $region37: #{tpu_custom_call.1} parent=5 // pred_check
        _
      $region38: #{tpu_custom_call.1} parent=5 // pred_check_branch
        %314 = sbr.rel (%p311) target = $region40
      $region39: #{tpu_custom_call.1} parent=5 // pred_region
        %s315 = ssub.s32 %s21, 1
        %s316 = sand.u32 %s52, 1
        %s317 = scalar_lea.sflag [#allocation4], %s316
        %s318 = sand.u32 %s52, 1
        %s319 = smul.addr %s318, 16
        %s320 = scalar_lea.vmem [#allocation3], %s319
        // Predicated region
        $region41: #{tpu_custom_call.1} parent=39 // pred_check
          %p321 = pneg %p65
        $region42: #{tpu_custom_call.1} parent=39 // pred_check_branch
          %323 = sbr.rel (%p321) target = $region44
        $region43: #{tpu_custom_call.1} parent=39 // pred_region
          %325 = dma.done %s317, 256
        $region44: #{tpu_custom_call.1} parent=39 // pred_fallthru
          _
        %s326 = sand.u32 %s26, 1
        %s327 = scalar_lea.sflag [#allocation7], %s326
        %s328 = sand.u32 %s84, 1
        %s329 = smul.addr %s328, 16
        %s330 = scalar_lea.vmem [#allocation6], %s329
        // Predicated region
        $region45: #{tpu_custom_call.1} parent=39 // pred_check
          %p331 = pneg %p97
        $region46: #{tpu_custom_call.1} parent=39 // pred_check_branch
          %333 = sbr.rel (%p331) target = $region48
        $region47: #{tpu_custom_call.1} parent=39 // pred_region
          %335 = dma.done %s327, 256
        $region48: #{tpu_custom_call.1} parent=39 // pred_fallthru
          _
        // Predicated region
        $region49: #{tpu_custom_call.1} parent=39 // pred_check
          %p336 = pneg %p118
        $region50: #{tpu_custom_call.1} parent=39 // pred_check_branch
          %338 = sbr.rel (%p336) target = $region52
        $region51: #{tpu_custom_call.1} parent=39 // pred_region
          %340 = dma.done [#allocation7], 640
        $region52: #{tpu_custom_call.1} parent=39 // pred_fallthru
          _
        // Predicated region
        $region53: #{tpu_custom_call.1} parent=39 // pred_check
          %p341 = pneg %p139
        $region54: #{tpu_custom_call.1} parent=39 // pred_check_branch
          %343 = sbr.rel (%p341) target = $region56
        $region55: #{tpu_custom_call.1} parent=39 // pred_region
          %345 = dma.done [#allocation10], 640
        $region56: #{tpu_custom_call.1} parent=39 // pred_fallthru
          _
        // Predicated region
        $region57: #{tpu_custom_call.1} parent=39 // pred_check
          %p346 = pneg %p165
        $region58: #{tpu_custom_call.1} parent=39 // pred_check_branch
          %348 = sbr.rel (%p346) target = $region60
        $region59: #{tpu_custom_call.1} parent=39 // pred_region
          %350 = dma.done [#allocation10], 256
        $region60: #{tpu_custom_call.1} parent=39 // pred_fallthru
          _
        %s351 = sand.u32 %s52, 1
        %s352 = scalar_lea.sflag [#allocation4], %s351
        %s353 = sand.u32 %s52, 1
        %s354 = smul.addr %s353, 16
        %s355 = scalar_lea.vmem [#allocation3], %s354
        %p356 = pneg %p65
        %p357 = pneg %p62
        %s358 = sand.u32 %s26, 1
        %s359 = scalar_lea.sflag [#allocation7], %s358
        %s360 = sand.u32 %s84, 1
        %s361 = smul.addr %s360, 16
        %s362 = scalar_lea.vmem [#allocation6], %s361
        %p363 = pneg %p97
        %p364 = pneg %p94
        %p365 = pneg %p118
        %p366 = pneg %p115
        %p367 = pneg %p139
        %p368 = pneg %p136
        %p369 = pneg %p165
        %p370 = pneg %p162
        %p371 = pneg %p193
        %p372 = pneg %p190
        %s373 = sand.u32 %s180, 1
        %s374 = scalar_lea.sflag [#allocation5], %s373
        %s375 = sand.u32 %s180, 1
        %s376 = smul.addr %s375, 16
        %s377 = scalar_lea.vmem [#allocation12], %s376
        %p378 = scmp.lt.s32.totalorder %s31, 0
        %s379 = scalar_select %p378, %s31, 0
        %s380 = smul.u32 2, %s379
        %p381 = scmp.lt.s32.totalorder %s31, 0
        %s382 = scalar_select %p381, %s31, 0
        %s383 = smul.u32 2, %s382
        %s384 = smul.u32 2, %s31
        %s385 = smul.u32 2, %s31
        %v386 = vld [vmem:[%s320] sm:$0xff]
        %v387 = vld [vmem:[%s320 + $0x8] sm:$0xff]
        %v388 = vld [vmem:[%s330] sm:$0xff]
        %v389 = vld [vmem:[%s330 + $0x8] sm:$0xff]
        %s390 = smul.u32 %s31, 16
        %s391 = ssub.s32 8, %s390
        %v392 = vlaneseq
        %v393 = vshrl.u32 %v392, 7
        %v394 = vadd.s32 %v393, 8
        %v395 = vstv %s391
        %vm396 = vcmp.lt.s32.totalorder %v393, %v395
        %vm397 = vcmp.lt.s32.totalorder %v394, %v395
        %v398 = vsel %vm396, %v386, 0.0
        %v399 = vsel %vm397, %v387, 0.0
        %v400 = vsel %vm396, %v388, 0.0
        %v401 = vsel %vm397, %v389, 0.0
        %v402 = vld [vmem:[#allocation8] sm:$0xff]
        %v403 = vld [vmem:[#allocation8 + $0x8] sm:$0xff]
        %v404 = vld [vmem:[#allocation8 + $0x10] sm:$0xff]
        %v405 = vld [vmem:[#allocation8 + $0x18] sm:$0xff]
        %v406 = vld [vmem:[#allocation8 + $0x20] sm:$0x1]
        %v407 = vld [vmem:[#allocation9] sm:$0xff]
        %v408 = vld [vmem:[#allocation9 + $0x8] sm:$0xff]
        %v409 = vld [vmem:[#allocation9 + $0x10] sm:$0xff]
        %v410 = vld [vmem:[#allocation9 + $0x18] sm:$0xff]
        %v411 = vld [vmem:[#allocation9 + $0x20] sm:$0x1]
        %vm412 = vcmask 269312
        %v414 = vsel %vm412, %v400, 0
        %v417 = vsel %vm412, %v401, 0
        %vm419 = vcmask 1040384
        %v421 = vsel %vm419, %v411, 0
        %423 = vmatpush.msra.mxu0 0.0
        %424 = vmatpush.msra.mxu0 0.0
        %425 = vmatpush.msra.mxu0 0.0
        %426 = vmatpush.msra.mxu0 0.0
        %427 = vmatpush.msra.mxu0 0.0
        %428 = vmatpush.msra.mxu0 0.0
        %429 = vmatpush.msra.mxu0 0.0
        %430 = vmatpush.msra.mxu0 0.0
        %431 = vmatpush.msra.mxu0 0.0
        %432 = vmatpush.msra.mxu0 0.0
        %433 = vmatpush.msra.mxu0 0.0
        %434 = vmatpush.msra.mxu0 %v421
        %435 = vmatpush.msra.mxu0 %v410
        %436 = vmatpush.msra.mxu0 %v409
        %437 = vmatpush.msra.mxu0 %v408
        %438 = vmatpush.msra.mxu0 %v407
        %439 = vmatmul.f32.gmra.mxu0 %v414
        %v440 = vpop.f32.mrf.mxu0
        %v441 = vadd.f32 0.0, %v440
        %442 = vmatmul.f32.gmra.mxu0 %v417
        %v443 = vpop.f32.mrf.mxu0
        %v444 = vadd.f32 0.0, %v443
        %445 = vdwg.mxu0
        %v447 = vsel %vm412, %v398, 0
        %v450 = vsel %vm412, %v399, 0
        %v453 = vsel %vm419, %v406, 0
        %455 = vmatpush.msra.mxu0 0.0
        %456 = vmatpush.msra.mxu0 0.0
        %457 = vmatpush.msra.mxu0 0.0
        %458 = vmatpush.msra.mxu0 0.0
        %459 = vmatpush.msra.mxu0 0.0
        %460 = vmatpush.msra.mxu0 0.0
        %461 = vmatpush.msra.mxu0 0.0
        %462 = vmatpush.msra.mxu0 0.0
        %463 = vmatpush.msra.mxu0 0.0
        %464 = vmatpush.msra.mxu0 0.0
        %465 = vmatpush.msra.mxu0 0.0
        %466 = vmatpush.msra.mxu0 %v453
        %467 = vmatpush.msra.mxu0 %v405
        %468 = vmatpush.msra.mxu0 %v404
        %469 = vmatpush.msra.mxu0 %v403
        %470 = vmatpush.msra.mxu0 %v402
        %471 = vmatmul.f32.gmra.mxu0 %v447
        %v472 = vpop.f32.mrf.mxu0
        %v473 = vadd.f32 %v441, %v472
        %474 = vmatmul.f32.gmra.mxu0 %v450
        %v475 = vpop.f32.mrf.mxu0
        %v476 = vadd.f32 %v444, %v475
        %477 = vdwg.mxu0
        %p478 = scmp.eq.s32.totalorder %s31, 0
        // Predicated region
        $region61: #{tpu_custom_call.1} parent=39 // pred_check
          %p479 = pneg %p478
        $region62: #{tpu_custom_call.1} parent=39 // pred_check_branch
          %481 = sbr.rel (%p479) target = $region64
        $region63: #{tpu_custom_call.1} parent=39 // pred_region
          %vm482 = vcmask 124928
          %483 = vst.msk [vmem:[#allocation2] sm:$0x7] %vm482, 0.0
        $region64: #{tpu_custom_call.1} parent=39 // pred_fallthru
          _
        %v484 = vld [vmem:[#allocation2] sm:$0x7]
        %487 = vrot.lane.b32.xlu0 %v473, 112
        %v488 = vpop.permute.xlu0 %487
        %489 = vrot.lane.b32.xlu0 %v476, 112
        %v490 = vpop.permute.xlu0 %489
        %v493 = vrot.slane %v488, 7
        %v494 = vrot.slane %v490, 7
        %vm495 = vcmp.lt.s32.totalorder %v393, 1
        %v496 = vsel %vm495, %v493, %v494
        %v497 = vsel %vm495, %v494, %v493
        %vm498 = vcmp.ge.s32.totalorder %v393, 1
        %vm499 = vcmp.ge.s32.totalorder %v394, 1
        %v500 = vsel %vm498, %v497, 0.0
        %v501 = vsel %vm499, %v496, 0.0
        %v502 = vadd.f32 %v473, %v500
        %v503 = vadd.f32 %v476, %v501
        %v504 = vsel %vm495, %v497, 0.0
        %v505 = vadd.f32 %v504, 0.0
        %506 = vrot.lane.b32.xlu0 %v473, 96
        %v507 = vpop.permute.xlu0 %506
        %508 = vrot.lane.b32.xlu0 %v476, 96
        %v509 = vpop.permute.xlu0 %508
        %v512 = vrot.slane %v507, 6
        %v513 = vrot.slane %v509, 6
        %vm514 = vcmp.lt.s32.totalorder %v393, 2
        %v515 = vsel %vm514, %v512, %v513
        %v516 = vsel %vm514, %v513, %v512
        %vm517 = vcmp.ge.s32.totalorder %v393, 2
        %vm518 = vcmp.ge.s32.totalorder %v394, 2
        %v519 = vsel %vm517, %v516, 0.0
        %v520 = vsel %vm518, %v515, 0.0
        %v521 = vadd.f32 %v502, %v519
        %v522 = vadd.f32 %v503, %v520
        %v523 = vsel %vm514, %v516, 0.0
        %v524 = vadd.f32 %v505, %v523
        %525 = vrot.lane.b32.xlu0 %v473, 80
        %v526 = vpop.permute.xlu0 %525
        %527 = vrot.lane.b32.xlu0 %v476, 80
        %v528 = vpop.permute.xlu0 %527
        %v531 = vrot.slane %v526, 5
        %v532 = vrot.slane %v528, 5
        %vm533 = vcmp.lt.s32.totalorder %v393, 3
        %v534 = vsel %vm533, %v531, %v532
        %v535 = vsel %vm533, %v532, %v531
        %vm536 = vcmp.ge.s32.totalorder %v393, 3
        %vm537 = vcmp.ge.s32.totalorder %v394, 3
        %v538 = vsel %vm536, %v535, 0.0
        %v539 = vsel %vm537, %v534, 0.0
        %v540 = vadd.f32 %v521, %v538
        %v541 = vadd.f32 %v522, %v539
        %v542 = vsel %vm533, %v535, 0.0
        %v543 = vadd.f32 %v524, %v542
        %vm544 = vcmask 124928
        %545 = vst.msk [vmem:[#allocation2] sm:$0x7] %vm544, %v543
        %v546 = vld [vmem:[#allocation11] sm:$0xff]
        %v547 = vld [vmem:[#allocation11 + $0x8] sm:$0xff]
        %v548 = vmul.f32 %v540, %v546
        %v549 = vmul.f32 %v541, %v547
        %vm550 = vcmask 130048
        %551 = vst.msk [vmem:[%s377] sm:$0xff] %vm550, %v548
        %552 = vst.msk [vmem:[%s377 + $0x8] sm:$0xff] %vm550, %v549
        %v553 = vld [vmem:[%s377] sm:$0x7]
        %v554 = vld [vmem:[#allocation11] sm:$0x7]
        %v555 = vmul.f32 %v484, %v554
        %v556 = vadd.f32 %v553, %v555
        %557 = vst.msk [vmem:[%s377] sm:$0x7] %vm544, %v556
        %s558 = sand.u32 %s180, 1
        %s559 = scalar_lea.sflag [#allocation5], %s558
        %s560 = sand.u32 %s180, 1
        %s561 = smul.addr %s560, 16
        %s562 = scalar_lea.vmem [#allocation12], %s561
        // Predicated region
        $region65: #{tpu_custom_call.1} parent=39 // pred_check
          %p563 = pneg %p190
        $region66: #{tpu_custom_call.1} parent=39 // pred_check_branch
          %565 = sbr.rel (%p563) target = $region68
        $region67: #{tpu_custom_call.1} parent=39 // pred_region
          %s566 = smul.u32 2, %s31
          %568 = vsyncadd %s559, 0
          %s569 = smul.addr %s30, 2
          %s570 = sadd.s32 %s566, %s569
          %s571 = smul.addr %s570, 8
          %s572 = scalar_lea.hbm %s5, %s571
          %s573 = sshll.u32 %s562, 4
          %s574 = int_to_ptr.vmem [resolvable:$true] %s573
          %s575 = sshll.u32 %s572, 4
          %s576 = int_to_ptr.hbm [resolvable:$true] %s575
          %581 = dma.vmem_to_hbm [thread:$0]  %s574, 256, %s576, %s559, 128, 128, 8
        $region68: #{tpu_custom_call.1} parent=39 // pred_fallthru
          _
      $region40: #{tpu_custom_call.1} parent=5 // pred_fallthru
        _
      %p582 = scmp.le.s32.totalorder 2, %s21
      // Predicated region
      $region69: #{tpu_custom_call.1} parent=5 // pred_check
        %p583 = pneg %p582
      $region70: #{tpu_custom_call.1} parent=5 // pred_check_branch
        %585 = sbr.rel (%p583) target = $region72
      $region71: #{tpu_custom_call.1} parent=5 // pred_region
        %s586 = ssub.s32 %s21, 2
        // Predicated region
        $region73: #{tpu_custom_call.1} parent=71 // pred_check
          %p587 = pneg %p196
        $region74: #{tpu_custom_call.1} parent=71 // pred_check_branch
          %589 = sbr.rel (%p587) target = $region76
        $region75: #{tpu_custom_call.1} parent=71 // pred_region
          %s590 = sand.u32 %s181, 1
          %s591 = scalar_lea.sflag [#allocation5], %s590
          %s592 = sand.u32 %s181, 1
          %s593 = smul.addr %s592, 16
          %s594 = scalar_lea.vmem [#allocation12], %s593
          %596 = dma.done %s591, 256
        $region76: #{tpu_custom_call.1} parent=71 // pred_fallthru
          _
      $region72: #{tpu_custom_call.1} parent=5 // pred_fallthru
        _
    $region6: #{tpu_custom_call.1} parent=1 // loop_footer
      %s25 = sadd.s32 1, %s21
    $region7: #{tpu_custom_call.1} parent=1 // loop_footer_branch
      %20 = sbr.rel target = $region3
    $region8: #{tpu_custom_call.1} parent=1 // loop_exit
      _
    %597 = vsyncpa [#allocation4], 1
    %s598 = scalar_lea.sflag [#allocation4], 1
    %599 = vsyncpa %s598, 1
    %600 = vsyncpa [#allocation7], 1
    %s601 = scalar_lea.sflag [#allocation7], 1
    %602 = vsyncpa %s601, 1
    %603 = vsyncpa [#allocation10], 1
    %604 = vsyncpa [#allocation5], 1
    %s605 = scalar_lea.sflag [#allocation5], 1
    %606 = vsyncpa %s605, 1

</llo_original>
